<compile_context>
chip_gen: v5e
topology: v5e:2x2
jax: 0.10.0
libtpu: 0.0.40
codegen_flags: <defaults>
</compile_context>

<pallas_src>
import jax
import jax.numpy as jnp
from jax.experimental import pallas as pl
from jax.experimental.pallas import tpu as pltpu

LANE = 128  # TPU lane width; channel dims are zero-padded to this.


# ----------------------------------------------------------------------------
# Fused kernel: conv stack + pools + BiLSTM(last) + MLP head
# ----------------------------------------------------------------------------

def dense_conv_kernel(x_ref, cw_ref, cb_ref,
                      wif_ref, whf_ref, bf_ref, wib_ref, bb_ref,
                      w1_ref, b1_ref, w2_ref, b2_ref, w3_ref, b3_ref,
                      o_ref, hbuf):
    # x_ref : (Bt, L, 128)   input tile, real channels in [0, Cin), rest zero
    # cw_ref: (7, 128, 128)  dense-K packed conv weights (bf16); rows
    #                        [k*H, k*H+cin) hold tap k, rest zero
    # cb_ref: (7, 1, 128)    conv biases (f32, zero-padded)
    # wif/wib: (128, 4H) bf16 LSTM input weights (rows >= H are zero)
    # whf   : (H, 4H) bf16   forward recurrent weight
    # bf/bb : (1, 4H) f32    b_ih + b_hh per direction
    # w1,b1 / w2,b2 / w3,b3 : MLP (bf16 weights, f32 biases; fc2/fc3 padded)
    # o_ref : (Bt, 128)      lane-dense output (cols >= output_size are zero)
    # hbuf  : (Bt, L+2, 128) f32 persistent halo scratch (rows 0, L+1 == halo)
    B, L0, _ = x_ref.shape
    H = whf_ref.shape[0]
    L1 = L0 // 2
    T = L0 // 4

    # ---- load activations into the halo scratch (halo rows stay zero) ----
    hbuf[...] = jnp.zeros_like(hbuf)
    hbuf[:, 1:L0 + 1, :] = x_ref[...]

    def conv_block(lo, hi, L):
        """Run conv layers [lo, hi) over sequence length L, in-place in hbuf."""
        def body(l, carry):
            w = cw_ref[l]                                  # (128, 128) bf16
            b = cb_ref[l]                                  # (1, 128)   f32
            xp = hbuf[:, 0:L + 2, :]                       # (B, L+2, 128) f32
            flat = xp.reshape(B * (L + 2), LANE)
            # Dense-K im2col slab: real channels live in lanes [0, H) and the
            # padded lanes are zero, so a lane roll by H / 2H followed by an
            # add places taps 1 and 2 at lane offsets H and 2H exactly.
            r1 = pltpu.roll(flat, H, 1).reshape(B, L + 2, LANE)
            r2 = pltpu.roll(flat, 2 * H, 1).reshape(B, L + 2, LANE)
            slab = xp[:, 0:L, :] + r1[:, 1:L + 1, :] + r2[:, 2:L + 2, :]
            y = jnp.dot(slab.reshape(B * L, LANE).astype(jnp.bfloat16), w,
                        preferred_element_type=jnp.float32) + b
            y = jnp.maximum(y, 0.0)                        # fused ReLU
            hbuf[:, 1:L + 1, :] = y.reshape(B, L, LANE)
            return carry
        jax.lax.fori_loop(lo, hi, body, 0)

    # conv1..conv4 (+ReLU) then pool1 (drop1 = identity at inference)
    conv_block(0, 4, L0)
    h = hbuf[:, 1:L0 + 1, :]
    hp = jnp.max(h.reshape(B, L1, 2, LANE), axis=2)        # MaxPool1d(2, 2)
    hbuf[:, 1:L1 + 1, :] = hp
    hbuf[:, L1 + 1:L0 + 2, :] = jnp.zeros((B, L0 + 1 - L1, LANE), jnp.float32)

    # conv5..conv7 (+ReLU) then pool2 (drop2 = identity at inference)
    conv_block(4, 7, L1)
    h = hbuf[:, 1:L1 + 1, :]
    h_seq = jnp.max(h.reshape(B, T, 2, LANE), axis=2)      # (B, T, 128)

    # ---- BiLSTM: only output[:, -1, :] is needed ----
    # Input projection hoisted out of the recurrence: one MXU matmul over all
    # timesteps (padded lanes * zero weight rows contribute 0).
    gx = (jnp.dot(h_seq.reshape(B * T, LANE).astype(jnp.bfloat16), wif_ref[...],
                  preferred_element_type=jnp.float32)
          + bf_ref[...]).reshape(B, T, 4 * H)

    hs = jnp.zeros((B, H), jnp.float32)
    cs = jnp.zeros((B, H), jnp.float32)
    # T = sequence_length // 4 is small & static here -> unrolled recurrence.
    # TODO(synk): for long sequences stage gx in a VMEM scratch and switch to
    # lax.fori_loop over t to bound code size / vreg live ranges.
    for t in range(T):
        g = gx[:, t, :] + jnp.dot(hs.astype(jnp.bfloat16), whf_ref[...],
                                  preferred_element_type=jnp.float32)
        i_g = jax.nn.sigmoid(g[:, 0 * H:1 * H])
        f_g = jax.nn.sigmoid(g[:, 1 * H:2 * H])
        g_g = jnp.tanh(g[:, 2 * H:3 * H])
        o_g = jax.nn.sigmoid(g[:, 3 * H:4 * H])
        cs = f_g * cs + i_g * g_g
        hs = o_g * jnp.tanh(cs)

    # Backward direction shortcut: output[:, -1, H:] is the backward hidden
    # state after a SINGLE step on x[:, T-1, :] from zero state (so
    # h0 @ W_hh_bwd == 0 and W_hh_bwd is not needed).  Exact only because the
    # model consumes just the last timestep of the LSTM output.
    gb = (jnp.dot(h_seq[:, T - 1, :].astype(jnp.bfloat16), wib_ref[...],
                  preferred_element_type=jnp.float32) + bb_ref[...])
    i_b = jax.nn.sigmoid(gb[:, 0 * H:1 * H])
    g_b = jnp.tanh(gb[:, 2 * H:3 * H])
    o_b = jax.nn.sigmoid(gb[:, 3 * H:4 * H])
    h_bwd = o_b * jnp.tanh(i_b * g_b)

    feat = jnp.concatenate([hs, h_bwd], axis=-1)           # (B, 2H)

    # ---- MLP head: fc1 -> ReLU -> fc2 -> ReLU -> fc3 (lane-dense store) ----
    h1 = jnp.maximum(
        jnp.dot(feat.astype(jnp.bfloat16), w1_ref[...],
                preferred_element_type=jnp.float32) + b1_ref[...], 0.0)
    h2 = jnp.maximum(
        jnp.dot(h1.astype(jnp.bfloat16), w2_ref[...],
                preferred_element_type=jnp.float32) + b2_ref[...], 0.0)
    o_ref[...] = (jnp.dot(h2.astype(jnp.bfloat16), w3_ref[...],
                          preferred_element_type=jnp.float32) + b3_ref[...])


# ----------------------------------------------------------------------------
# Wrapper: batch grid + BlockSpecs
# ----------------------------------------------------------------------------

def dense_conv_forward(x, p, output_size):
    # x: (B, seq, input_size) -- same layout as the PyTorch module's input.
    B, L, Cin = x.shape
    H = p["whf"].shape[0]
    assert L % 4 == 0, "sequence_length must be divisible by 4 (two 2x pools)"
    assert Cin <= H and 3 * H <= LANE, "dense-K packing needs Cin<=H, 3H<=128"

    # Batch tile: aim for B_TILE*L >= 256 so the conv matmul M dim fills the
    # MXU; multi-tile cases use an 8-aligned tile for sublane-aligned blocks.
    target = max(1, 256 // L)
    if B <= target:
        b_tile, b_pad = B, B
    else:
        b_tile = max(8, (target // 8) * 8)
        b_pad = ((B + b_tile - 1) // b_tile) * b_tile

    # One-time lane/batch padding of the input; everything else stays inside
    # the single fused kernel (VMEM / halo-scratch resident).
    xp = jnp.pad(x, ((0, b_pad - B), (0, 0), (0, LANE - Cin)))

    def full_spec(arr):
        nd = arr.ndim
        return pl.BlockSpec(arr.shape, lambda b, _nd=nd: (0,) * _nd)

    weights = (p["cw"], p["cb"], p["wif"], p["whf"], p["bf"],
               p["wib"], p["bb"], p["w1"], p["b1"], p["w2"], p["b2"],
               p["w3"], p["b3"])

    in_specs = ([pl.BlockSpec((b_tile, L, LANE), lambda b: (b, 0, 0))]
                + [full_spec(a) for a in weights])
    out_spec = pl.BlockSpec((b_tile, LANE), lambda b: (b, 0))

    y = pl.pallas_call(
        dense_conv_kernel,
        out_shape=jax.ShapeDtypeStruct((b_pad, LANE), jnp.float32),
        grid=(b_pad // b_tile,),
        in_specs=in_specs,
        out_specs=out_spec,
        scratch_shapes=[pltpu.VMEM((b_tile, L + 2, LANE), jnp.float32)],
        compiler_params=pltpu.CompilerParams(
            dimension_semantics=("parallel",),          # both TCs on v7x
            vmem_limit_bytes=32 * 1024 * 1024),         # safe on v5e/v6e/v7x
    )(xp, *weights)
    return y[:B, :output_size]


# ----------------------------------------------------------------------------
# Deterministic parameter construction (PyTorch-style uniform init),
# re-laid-out, zero-padded, dense-K packed and cast for the fused kernel.
# ----------------------------------------------------------------------------

def _uniform(key, shape, bound):
    return jax.random.uniform(key, shape, jnp.float32, -bound, bound)


def make_params(key, input_size, hidden_size, output_size):
    H = hidden_size
    assert 3 * H <= LANE and input_size <= H
    h1, h2 = 256, 96
    keys = iter(jax.random.split(key, 64))
    p = {}

    def conv_dense_k(cin, cout):
        # PyTorch Conv1d weight (cout, cin, 3); packed so row k*H + c maps to
        # tap k / input channel c of the 128-lane dense im2col slab.
        bound = 1.0 / (cin * 3) ** 0.5
        w = _uniform(next(keys), (cout, cin, 3), bound)
        b = _uniform(next(keys), (cout,), bound)
        wp = jnp.zeros((LANE, LANE), jnp.float32)
        for k in range(3):
            wp = wp.at[k * H:k * H + cin, :cout].set(jnp.transpose(w[:, :, k]))
        bp = jnp.pad(b, (0, LANE - cout)).reshape(1, LANE)
        return wp.astype(jnp.bfloat16), bp

    convs = [conv_dense_k(input_size, H)] + [conv_dense_k(H, H) for _ in range(6)]
    p["cw"] = jnp.stack([c[0] for c in convs])            # (7, 128, 128) bf16
    p["cb"] = jnp.stack([c[1] for c in convs])            # (7, 1, 128)   f32

    # Bidirectional LSTM (PyTorch gate order i, f, g, o); weights transposed
    # to (in, 4H); b_ih + b_hh pre-summed; input weights padded to 128 rows.
    bound = 1.0 / H ** 0.5

    def lstm_dir():
        w_ih = _uniform(next(keys), (4 * H, H), bound)
        w_hh = _uniform(next(keys), (4 * H, H), bound)
        b_ih = _uniform(next(keys), (4 * H,), bound)
        b_hh = _uniform(next(keys), (4 * H,), bound)
        w_i = jnp.pad(w_ih.T, ((0, LANE - H), (0, 0)))     # (128, 4H)
        return (w_i.astype(jnp.bfloat16), w_hh.T.astype(jnp.bfloat16),
                (b_ih + b_hh).reshape(1, 4 * H))

    p["wif"], p["whf"], p["bf"] = lstm_dir()
    wib, _whb_unused, bb = lstm_dir()   # W_hh_bwd unused (single step from 0)
    p["wib"], p["bb"] = wib, bb

    def linear(fan_in, fan_out, pad_in=0, pad_out=0):
        bound = 1.0 / fan_in ** 0.5
        w = _uniform(next(keys), (fan_out, fan_in), bound)
        b = _uniform(next(keys), (fan_out,), bound)
        w = jnp.pad(w.T, ((0, pad_in), (0, pad_out)))
        b = jnp.pad(b, (0, pad_out)).reshape(1, fan_out + pad_out)
        return w.astype(jnp.bfloat16), b

    p["w1"], p["b1"] = linear(2 * H, h1)                                # (64, 256)
    p["w2"], p["b2"] = linear(h1, h2, pad_out=LANE - h2)                # (256, 128)
    p["w3"], p["b3"] = linear(h2, output_size, pad_in=LANE - h2,
                              pad_out=LANE - output_size)               # (128, 128)
    return p


# ----------------------------------------------------------------------------
# Main
# ----------------------------------------------------------------------------

if __name__ == "__main__":
    batch = 2
    input_size = 4
    hidden_size = 32
    output_size = 5
    sequence_length = 8        # divisible by 4 (two maxpools of 2)

    key = jax.random.PRNGKey(0)
    k_params, k_x = jax.random.split(key)
    params = make_params(k_params, input_size, hidden_size, output_size)
    x = jax.random.normal(k_x, (batch, sequence_length, input_size),
                          jnp.float32)

    fwd = jax.jit(lambda xx: dense_conv_forward(xx, params, output_size))
    y = jax.block_until_ready(fwd(x))

    assert y.shape == (batch, output_size), y.shape
    assert bool(jnp.all(jnp.isfinite(y)))
    print("KERNEL_OK")
</pallas_src>

<mosaic_0001>
module attributes {stable_mosaic.version = 11 : i64} {
  func.func @dense_conv_kernel(%arg0: i32, %arg1: memref<2x8x128xf32, #tpu.memory_space<vmem>>, %arg2: memref<7x128x128xbf16, #tpu.memory_space<vmem>>, %arg3: memref<7x1x128xf32, #tpu.memory_space<vmem>>, %arg4: memref<128x128xbf16, #tpu.memory_space<vmem>>, %arg5: memref<32x128xbf16, #tpu.memory_space<vmem>>, %arg6: memref<1x128xf32, #tpu.memory_space<vmem>>, %arg7: memref<128x128xbf16, #tpu.memory_space<vmem>>, %arg8: memref<1x128xf32, #tpu.memory_space<vmem>>, %arg9: memref<64x256xbf16, #tpu.memory_space<vmem>>, %arg10: memref<1x256xf32, #tpu.memory_space<vmem>>, %arg11: memref<256x128xbf16, #tpu.memory_space<vmem>>, %arg12: memref<1x128xf32, #tpu.memory_space<vmem>>, %arg13: memref<128x128xbf16, #tpu.memory_space<vmem>>, %arg14: memref<1x128xf32, #tpu.memory_space<vmem>>, %arg15: memref<2x128xf32, #tpu.memory_space<vmem>>, %arg16: memref<2x10x128xf32, #tpu.memory_space<vmem>>) attributes {dimension_semantics = [#tpu.dimension_semantics<parallel>], iteration_bounds = array<i64: 1>, scalar_prefetch = 0 : i64, scratch_operands = 1 : i64, tpu.core_type = #tpu.core_type<tc>, window_params = [{transform_indices = @transform_0, window_bounds = array<i64: 2, 8, 128>}, {pipeline_mode = #tpu.pipeline_mode<synchronous>, transform_indices = @transform_1, window_bounds = array<i64: 7, 128, 128>}, {pipeline_mode = #tpu.pipeline_mode<synchronous>, transform_indices = @transform_2, window_bounds = array<i64: 7, 1, 128>}, {pipeline_mode = #tpu.pipeline_mode<synchronous>, transform_indices = @transform_3, window_bounds = array<i64: 128, 128>}, {pipeline_mode = #tpu.pipeline_mode<synchronous>, transform_indices = @transform_4, window_bounds = array<i64: 32, 128>}, {pipeline_mode = #tpu.pipeline_mode<synchronous>, transform_indices = @transform_5, window_bounds = array<i64: 1, 128>}, {pipeline_mode = #tpu.pipeline_mode<synchronous>, transform_indices = @transform_6, window_bounds = array<i64: 128, 128>}, {pipeline_mode = #tpu.pipeline_mode<synchronous>, transform_indices = @transform_7, window_bounds = array<i64: 1, 128>}, {pipeline_mode = #tpu.pipeline_mode<synchronous>, transform_indices = @transform_8, window_bounds = array<i64: 64, 256>}, {pipeline_mode = #tpu.pipeline_mode<synchronous>, transform_indices = @transform_9, window_bounds = array<i64: 1, 256>}, {pipeline_mode = #tpu.pipeline_mode<synchronous>, transform_indices = @transform_10, window_bounds = array<i64: 256, 128>}, {pipeline_mode = #tpu.pipeline_mode<synchronous>, transform_indices = @transform_11, window_bounds = array<i64: 1, 128>}, {pipeline_mode = #tpu.pipeline_mode<synchronous>, transform_indices = @transform_12, window_bounds = array<i64: 128, 128>}, {pipeline_mode = #tpu.pipeline_mode<synchronous>, transform_indices = @transform_13, window_bounds = array<i64: 1, 128>}, {transform_indices = @transform_14, window_bounds = array<i64: 2, 128>}]} {
    %cst = arith.constant 0.000000e+00 : f32
    %0 = vector.broadcast %cst : f32 to vector<2x10x128xf32>
    %c0 = arith.constant 0 : index
    %c0_0 = arith.constant 0 : index
    %c0_1 = arith.constant 0 : index
    %1 = vector.load %arg16[%c0, %c0_0, %c0_1] : memref<2x10x128xf32, #tpu.memory_space<vmem>>, vector<2x10x128xf32>
    tpu.vector_store %arg16[%c0, %c0_0, %c0_1], %0 {strides = array<i32>} : memref<2x10x128xf32, #tpu.memory_space<vmem>>, vector<2x10x128xf32>,
    %c0_2 = arith.constant 0 : index
    %c0_3 = arith.constant 0 : index
    %c0_4 = arith.constant 0 : index
    %2 = vector.load %arg1[%c0_2, %c0_3, %c0_4] : memref<2x8x128xf32, #tpu.memory_space<vmem>>, vector<2x8x128xf32>
    %c0_5 = arith.constant 0 : index
    %c1 = arith.constant 1 : index
    %c0_6 = arith.constant 0 : index
    %3 = vector.load %arg16[%c0_5, %c1, %c0_6] : memref<2x10x128xf32, #tpu.memory_space<vmem>>, vector<2x8x128xf32>
    tpu.vector_store %arg16[%c0_5, %c1, %c0_6], %2 {strides = array<i32>} : memref<2x10x128xf32, #tpu.memory_space<vmem>>, vector<2x8x128xf32>,
    %c0_i32 = arith.constant 0 : i32
    %c4_i32 = arith.constant 4 : i32
    %4 = arith.addi %c0_i32, %c4_i32 : i32
    %c1_i32 = arith.constant 1 : i32
    scf.for %arg17 = %c0_i32 to %4 step %c1_i32  : i32 {
      %136 = arith.index_cast %arg17 : i32 to index
      %c0_70 = arith.constant 0 : index
      %c0_71 = arith.constant 0 : index
      %137 = vector.load %arg2[%136, %c0_70, %c0_71] : memref<7x128x128xbf16, #tpu.memory_space<vmem>>, vector<1x128x128xbf16>
      %138 = vector.shape_cast %137 : vector<1x128x128xbf16> to vector<128x128xbf16>
      %139 = arith.index_cast %arg17 : i32 to index
      %c0_72 = arith.constant 0 : index
      %c0_73 = arith.constant 0 : index
      %140 = vector.load %arg3[%139, %c0_72, %c0_73] : memref<7x1x128xf32, #tpu.memory_space<vmem>>, vector<1x1x128xf32>
      %141 = vector.shape_cast %140 : vector<1x1x128xf32> to vector<1x128xf32>
      %c0_74 = arith.constant 0 : index
      %c0_75 = arith.constant 0 : index
      %c0_76 = arith.constant 0 : index
      %142 = vector.load %arg16[%c0_74, %c0_75, %c0_76] : memref<2x10x128xf32, #tpu.memory_space<vmem>>, vector<2x10x128xf32>
      %143 = vector.shape_cast %142 : vector<2x10x128xf32> to vector<20x128xf32>
      %c32_i32 = arith.constant 32 : i32
      %144 = tpu.dynamic_rotate %143 by %c32_i32 dim 1 : vector<20x128xf32>, i32 -> vector<20x128xf32>
      %145 = vector.shape_cast %144 : vector<20x128xf32> to vector<2x10x128xf32>
      %c64_i32 = arith.constant 64 : i32
      %146 = tpu.dynamic_rotate %143 by %c64_i32 dim 1 : vector<20x128xf32>, i32 -> vector<20x128xf32>
      %147 = vector.shape_cast %146 : vector<20x128xf32> to vector<2x10x128xf32>
      %148 = vector.extract_strided_slice %142 {offsets = [0, 0, 0], sizes = [2, 8, 128], strides = [1, 1, 1]} : vector<2x10x128xf32> to vector<2x8x128xf32>
      %149 = vector.extract_strided_slice %145 {offsets = [0, 1, 0], sizes = [2, 8, 128], strides = [1, 1, 1]} : vector<2x10x128xf32> to vector<2x8x128xf32>
      %150 = arith.addf %148, %149 : vector<2x8x128xf32>
      %151 = vector.extract_strided_slice %147 {offsets = [0, 2, 0], sizes = [2, 8, 128], strides = [1, 1, 1]} : vector<2x10x128xf32> to vector<2x8x128xf32>
      %152 = arith.addf %150, %151 : vector<2x8x128xf32>
      %153 = vector.shape_cast %152 : vector<2x8x128xf32> to vector<16x128xf32>
      %154 = arith.truncf %153 : vector<16x128xf32> to vector<16x128xbf16>
      %cst_77 = arith.constant dense<0.000000e+00> : vector<16x128xf32>
      %155 = tpu.matmul %154, %138, %cst_77 {dimension_numbers = #tpu.dot_dimension_numbers<[1], [0], [0], [1], [0, 0, 1, 1], [], []>} : vector<16x128xbf16>, vector<128x128xbf16>, vector<16x128xf32> -> vector<16x128xf32>
      %156 = vector.broadcast %141 : vector<1x128xf32> to vector<16x128xf32>
      %157 = arith.addf %155, %156 : vector<16x128xf32>
      %cst_78 = arith.constant 0.000000e+00 : f32
      %158 = vector.broadcast %cst_78 : f32 to vector<16x128xf32>
      %159 = arith.maximumf %157, %158 : vector<16x128xf32>
      %160 = vector.shape_cast %159 : vector<16x128xf32> to vector<2x8x128xf32>
      %c0_79 = arith.constant 0 : index
      %c1_80 = arith.constant 1 : index
      %c0_81 = arith.constant 0 : index
      %161 = vector.load %arg16[%c0_79, %c1_80, %c0_81] : memref<2x10x128xf32, #tpu.memory_space<vmem>>, vector<2x8x128xf32>
      tpu.vector_store %arg16[%c0_79, %c1_80, %c0_81], %160 {strides = array<i32>} : memref<2x10x128xf32, #tpu.memory_space<vmem>>, vector<2x8x128xf32>,
    }
    %c4_i32_7 = arith.constant 4 : i32
    %c0_8 = arith.constant 0 : index
    %c1_9 = arith.constant 1 : index
    %c0_10 = arith.constant 0 : index
    %5 = vector.load %arg16[%c0_8, %c1_9, %c0_10] : memref<2x10x128xf32, #tpu.memory_space<vmem>>, vector<2x8x128xf32>
    %6 = vector.shape_cast %5 : vector<2x8x128xf32> to vector<2x4x2x128xf32>
    %cst_11 = arith.constant dense<0xFF800000> : vector<2x4x128xf32>
    %7 = vector.multi_reduction <maximumf>, %6, %cst_11 [2] : vector<2x4x2x128xf32> to vector<2x4x128xf32>
    %c0_12 = arith.constant 0 : index
    %c1_13 = arith.constant 1 : index
    %c0_14 = arith.constant 0 : index
    %8 = vector.load %arg16[%c0_12, %c1_13, %c0_14] : memref<2x10x128xf32, #tpu.memory_space<vmem>>, vector<2x4x128xf32>
    tpu.vector_store %arg16[%c0_12, %c1_13, %c0_14], %7 {strides = array<i32>} : memref<2x10x128xf32, #tpu.memory_space<vmem>>, vector<2x4x128xf32>,
    %cst_15 = arith.constant 0.000000e+00 : f32
    %9 = vector.broadcast %cst_15 : f32 to vector<2x5x128xf32>
    %c0_16 = arith.constant 0 : index
    %c5 = arith.constant 5 : index
    %c0_17 = arith.constant 0 : index
    %10 = vector.load %arg16[%c0_16, %c5, %c0_17] : memref<2x10x128xf32, #tpu.memory_space<vmem>>, vector<2x5x128xf32>
    tpu.vector_store %arg16[%c0_16, %c5, %c0_17], %9 {strides = array<i32>} : memref<2x10x128xf32, #tpu.memory_space<vmem>>, vector<2x5x128xf32>,
    %c4_i32_18 = arith.constant 4 : i32
    %c3_i32 = arith.constant 3 : i32
    %11 = arith.addi %c4_i32_18, %c3_i32 : i32
    %c1_i32_19 = arith.constant 1 : i32
    scf.for %arg17 = %c4_i32_18 to %11 step %c1_i32_19  : i32 {
      %136 = arith.index_cast %arg17 : i32 to index
      %c0_70 = arith.constant 0 : index
      %c0_71 = arith.constant 0 : index
      %137 = vector.load %arg2[%136, %c0_70, %c0_71] : memref<7x128x128xbf16, #tpu.memory_space<vmem>>, vector<1x128x128xbf16>
      %138 = vector.shape_cast %137 : vector<1x128x128xbf16> to vector<128x128xbf16>
      %139 = arith.index_cast %arg17 : i32 to index
      %c0_72 = arith.constant 0 : index
      %c0_73 = arith.constant 0 : index
      %140 = vector.load %arg3[%139, %c0_72, %c0_73] : memref<7x1x128xf32, #tpu.memory_space<vmem>>, vector<1x1x128xf32>
      %141 = vector.shape_cast %140 : vector<1x1x128xf32> to vector<1x128xf32>
      %c0_74 = arith.constant 0 : index
      %c0_75 = arith.constant 0 : index
      %c0_76 = arith.constant 0 : index
      %142 = vector.load %arg16[%c0_74, %c0_75, %c0_76] : memref<2x10x128xf32, #tpu.memory_space<vmem>>, vector<2x6x128xf32>
      %143 = vector.shape_cast %142 : vector<2x6x128xf32> to vector<12x128xf32>
      %c32_i32 = arith.constant 32 : i32
      %144 = tpu.dynamic_rotate %143 by %c32_i32 dim 1 : vector<12x128xf32>, i32 -> vector<12x128xf32>
      %145 = vector.shape_cast %144 : vector<12x128xf32> to vector<2x6x128xf32>
      %c64_i32 = arith.constant 64 : i32
      %146 = tpu.dynamic_rotate %143 by %c64_i32 dim 1 : vector<12x128xf32>, i32 -> vector<12x128xf32>
      %147 = vector.shape_cast %146 : vector<12x128xf32> to vector<2x6x128xf32>
      %148 = vector.extract_strided_slice %142 {offsets = [0, 0, 0], sizes = [2, 4, 128], strides = [1, 1, 1]} : vector<2x6x128xf32> to vector<2x4x128xf32>
      %149 = vector.extract_strided_slice %145 {offsets = [0, 1, 0], sizes = [2, 4, 128], strides = [1, 1, 1]} : vector<2x6x128xf32> to vector<2x4x128xf32>
      %150 = arith.addf %148, %149 : vector<2x4x128xf32>
      %151 = vector.extract_strided_slice %147 {offsets = [0, 2, 0], sizes = [2, 4, 128], strides = [1, 1, 1]} : vector<2x6x128xf32> to vector<2x4x128xf32>
      %152 = arith.addf %150, %151 : vector<2x4x128xf32>
      %153 = vector.shape_cast %152 : vector<2x4x128xf32> to vector<8x128xf32>
      %154 = arith.truncf %153 : vector<8x128xf32> to vector<8x128xbf16>
      %cst_77 = arith.constant dense<0.000000e+00> : vector<8x128xf32>
      %155 = tpu.matmul %154, %138, %cst_77 {dimension_numbers = #tpu.dot_dimension_numbers<[1], [0], [0], [1], [0, 0, 1, 1], [], []>} : vector<8x128xbf16>, vector<128x128xbf16>, vector<8x128xf32> -> vector<8x128xf32>
      %156 = vector.broadcast %141 : vector<1x128xf32> to vector<8x128xf32>
      %157 = arith.addf %155, %156 : vector<8x128xf32>
      %cst_78 = arith.constant 0.000000e+00 : f32
      %158 = vector.broadcast %cst_78 : f32 to vector<8x128xf32>
      %159 = arith.maximumf %157, %158 : vector<8x128xf32>
      %160 = vector.shape_cast %159 : vector<8x128xf32> to vector<2x4x128xf32>
      %c0_79 = arith.constant 0 : index
      %c1_80 = arith.constant 1 : index
      %c0_81 = arith.constant 0 : index
      %161 = vector.load %arg16[%c0_79, %c1_80, %c0_81] : memref<2x10x128xf32, #tpu.memory_space<vmem>>, vector<2x4x128xf32>
      tpu.vector_store %arg16[%c0_79, %c1_80, %c0_81], %160 {strides = array<i32>} : memref<2x10x128xf32, #tpu.memory_space<vmem>>, vector<2x4x128xf32>,
    }
    %c3_i32_20 = arith.constant 3 : i32
    %c0_21 = arith.constant 0 : index
    %c1_22 = arith.constant 1 : index
    %c0_23 = arith.constant 0 : index
    %12 = vector.load %arg16[%c0_21, %c1_22, %c0_23] : memref<2x10x128xf32, #tpu.memory_space<vmem>>, vector<2x4x128xf32>
    %13 = vector.shape_cast %12 : vector<2x4x128xf32> to vector<2x2x2x128xf32>
    %cst_24 = arith.constant dense<0xFF800000> : vector<2x2x128xf32>
    %14 = vector.multi_reduction <maximumf>, %13, %cst_24 [2] : vector<2x2x2x128xf32> to vector<2x2x128xf32>
    %15 = vector.shape_cast %14 : vector<2x2x128xf32> to vector<4x128xf32>
    %16 = arith.truncf %15 : vector<4x128xf32> to vector<4x128xbf16>
    %c0_25 = arith.constant 0 : index
    %c0_26 = arith.constant 0 : index
    %17 = vector.load %arg4[%c0_25, %c0_26] : memref<128x128xbf16, #tpu.memory_space<vmem>>, vector<128x128xbf16>
    %cst_27 = arith.constant dense<0.000000e+00> : vector<4x128xf32>
    %18 = tpu.matmul %16, %17, %cst_27 {dimension_numbers = #tpu.dot_dimension_numbers<[1], [0], [0], [1], [0, 0, 1, 1], [], []>} : vector<4x128xbf16>, vector<128x128xbf16>, vector<4x128xf32> -> vector<4x128xf32>
    %c0_28 = arith.constant 0 : index
    %c0_29 = arith.constant 0 : index
    %19 = vector.load %arg6[%c0_28, %c0_29] : memref<1x128xf32, #tpu.memory_space<vmem>>, vector<1x128xf32>
    %20 = vector.broadcast %19 : vector<1x128xf32> to vector<4x128xf32>
    %21 = arith.addf %18, %20 : vector<4x128xf32>
    %22 = vector.shape_cast %21 : vector<4x128xf32> to vector<2x2x128xf32>
    %cst_30 = arith.constant 0.000000e+00 : f32
    %23 = vector.broadcast %cst_30 : f32 to vector<2x32xf32>
    %cst_31 = arith.constant 0.000000e+00 : f32
    %24 = vector.broadcast %cst_31 : f32 to vector<2x32xf32>
    %25 = vector.extract_strided_slice %22 {offsets = [0, 0, 0], sizes = [2, 1, 128], strides = [1, 1, 1]} : vector<2x2x128xf32> to vector<2x1x128xf32>
    %26 = vector.shape_cast %25 : vector<2x1x128xf32> to vector<2x128xf32>
    %27 = arith.truncf %23 : vector<2x32xf32> to vector<2x32xbf16>
    %c0_32 = arith.constant 0 : index
    %c0_33 = arith.constant 0 : index
    %28 = vector.load %arg5[%c0_32, %c0_33] : memref<32x128xbf16, #tpu.memory_space<vmem>>, vector<32x128xbf16>
    %cst_34 = arith.constant dense<0.000000e+00> : vector<2x128xf32>
    %29 = tpu.matmul %27, %28, %cst_34 {dimension_numbers = #tpu.dot_dimension_numbers<[1], [0], [0], [1], [0, 0, 1, 1], [], []>} : vector<2x32xbf16>, vector<32x128xbf16>, vector<2x128xf32> -> vector<2x128xf32>
    %30 = arith.addf %26, %29 : vector<2x128xf32>
    %31 = vector.extract_strided_slice %30 {offsets = [0, 0], sizes = [2, 32], strides = [1, 1]} : vector<2x128xf32> to vector<2x32xf32>
    %32 = arith.negf %31 : vector<2x32xf32>
    %33 = math.exp %32 : vector<2x32xf32>
    %cst_35 = arith.constant 1.000000e+00 : f32
    %34 = vector.broadcast %cst_35 : f32 to vector<2x32xf32>
    %35 = arith.addf %34, %33 : vector<2x32xf32>
    %36 = arith.divf %34, %35 : vector<2x32xf32>
    %37 = vector.extract_strided_slice %30 {offsets = [0, 32], sizes = [2, 32], strides = [1, 1]} : vector<2x128xf32> to vector<2x32xf32>
    %38 = arith.negf %37 : vector<2x32xf32>
    %39 = math.exp %38 : vector<2x32xf32>
    %cst_36 = arith.constant 1.000000e+00 : f32
    %40 = vector.broadcast %cst_36 : f32 to vector<2x32xf32>
    %41 = arith.addf %40, %39 : vector<2x32xf32>
    %42 = arith.divf %40, %41 : vector<2x32xf32>
    %43 = vector.extract_strided_slice %30 {offsets = [0, 64], sizes = [2, 32], strides = [1, 1]} : vector<2x128xf32> to vector<2x32xf32>
    %44 = math.tanh %43 : vector<2x32xf32>
    %45 = vector.extract_strided_slice %30 {offsets = [0, 96], sizes = [2, 32], strides = [1, 1]} : vector<2x128xf32> to vector<2x32xf32>
    %46 = arith.negf %45 : vector<2x32xf32>
    %47 = math.exp %46 : vector<2x32xf32>
    %cst_37 = arith.constant 1.000000e+00 : f32
    %48 = vector.broadcast %cst_37 : f32 to vector<2x32xf32>
    %49 = arith.addf %48, %47 : vector<2x32xf32>
    %50 = arith.divf %48, %49 : vector<2x32xf32>
    %51 = arith.mulf %42, %24 : vector<2x32xf32>
    %52 = arith.mulf %36, %44 : vector<2x32xf32>
    %53 = arith.addf %51, %52 : vector<2x32xf32>
    %54 = math.tanh %53 : vector<2x32xf32>
    %55 = arith.mulf %50, %54 : vector<2x32xf32>
    %56 = vector.extract_strided_slice %22 {offsets = [0, 1, 0], sizes = [2, 1, 128], strides = [1, 1, 1]} : vector<2x2x128xf32> to vector<2x1x128xf32>
    %57 = vector.shape_cast %56 : vector<2x1x128xf32> to vector<2x128xf32>
    %58 = arith.truncf %55 : vector<2x32xf32> to vector<2x32xbf16>
    %c0_38 = arith.constant 0 : index
    %c0_39 = arith.constant 0 : index
    %59 = vector.load %arg5[%c0_38, %c0_39] : memref<32x128xbf16, #tpu.memory_space<vmem>>, vector<32x128xbf16>
    %cst_40 = arith.constant dense<0.000000e+00> : vector<2x128xf32>
    %60 = tpu.matmul %58, %59, %cst_40 {dimension_numbers = #tpu.dot_dimension_numbers<[1], [0], [0], [1], [0, 0, 1, 1], [], []>} : vector<2x32xbf16>, vector<32x128xbf16>, vector<2x128xf32> -> vector<2x128xf32>
    %61 = arith.addf %57, %60 : vector<2x128xf32>
    %62 = vector.extract_strided_slice %61 {offsets = [0, 0], sizes = [2, 32], strides = [1, 1]} : vector<2x128xf32> to vector<2x32xf32>
    %63 = arith.negf %62 : vector<2x32xf32>
    %64 = math.exp %63 : vector<2x32xf32>
    %cst_41 = arith.constant 1.000000e+00 : f32
    %65 = vector.broadcast %cst_41 : f32 to vector<2x32xf32>
    %66 = arith.addf %65, %64 : vector<2x32xf32>
    %67 = arith.divf %65, %66 : vector<2x32xf32>
    %68 = vector.extract_strided_slice %61 {offsets = [0, 32], sizes = [2, 32], strides = [1, 1]} : vector<2x128xf32> to vector<2x32xf32>
    %69 = arith.negf %68 : vector<2x32xf32>
    %70 = math.exp %69 : vector<2x32xf32>
    %cst_42 = arith.constant 1.000000e+00 : f32
    %71 = vector.broadcast %cst_42 : f32 to vector<2x32xf32>
    %72 = arith.addf %71, %70 : vector<2x32xf32>
    %73 = arith.divf %71, %72 : vector<2x32xf32>
    %74 = vector.extract_strided_slice %61 {offsets = [0, 64], sizes = [2, 32], strides = [1, 1]} : vector<2x128xf32> to vector<2x32xf32>
    %75 = math.tanh %74 : vector<2x32xf32>
    %76 = vector.extract_strided_slice %61 {offsets = [0, 96], sizes = [2, 32], strides = [1, 1]} : vector<2x128xf32> to vector<2x32xf32>
    %77 = arith.negf %76 : vector<2x32xf32>
    %78 = math.exp %77 : vector<2x32xf32>
    %cst_43 = arith.constant 1.000000e+00 : f32
    %79 = vector.broadcast %cst_43 : f32 to vector<2x32xf32>
    %80 = arith.addf %79, %78 : vector<2x32xf32>
    %81 = arith.divf %79, %80 : vector<2x32xf32>
    %82 = arith.mulf %73, %53 : vector<2x32xf32>
    %83 = arith.mulf %67, %75 : vector<2x32xf32>
    %84 = arith.addf %82, %83 : vector<2x32xf32>
    %85 = math.tanh %84 : vector<2x32xf32>
    %86 = arith.mulf %81, %85 : vector<2x32xf32>
    %87 = vector.extract_strided_slice %14 {offsets = [0, 1, 0], sizes = [2, 1, 128], strides = [1, 1, 1]} : vector<2x2x128xf32> to vector<2x1x128xf32>
    %88 = vector.shape_cast %87 : vector<2x1x128xf32> to vector<2x128xf32>
    %89 = arith.truncf %88 : vector<2x128xf32> to vector<2x128xbf16>
    %c0_44 = arith.constant 0 : index
    %c0_45 = arith.constant 0 : index
    %90 = vector.load %arg7[%c0_44, %c0_45] : memref<128x128xbf16, #tpu.memory_space<vmem>>, vector<128x128xbf16>
    %cst_46 = arith.constant dense<0.000000e+00> : vector<2x128xf32>
    %91 = tpu.matmul %89, %90, %cst_46 {dimension_numbers = #tpu.dot_dimension_numbers<[1], [0], [0], [1], [0, 0, 1, 1], [], []>} : vector<2x128xbf16>, vector<128x128xbf16>, vector<2x128xf32> -> vector<2x128xf32>
    %c0_47 = arith.constant 0 : index
    %c0_48 = arith.constant 0 : index
    %92 = vector.load %arg8[%c0_47, %c0_48] : memref<1x128xf32, #tpu.memory_space<vmem>>, vector<1x128xf32>
    %93 = vector.broadcast %92 : vector<1x128xf32> to vector<2x128xf32>
    %94 = arith.addf %91, %93 : vector<2x128xf32>
    %95 = vector.extract_strided_slice %94 {offsets = [0, 0], sizes = [2, 32], strides = [1, 1]} : vector<2x128xf32> to vector<2x32xf32>
    %96 = arith.negf %95 : vector<2x32xf32>
    %97 = math.exp %96 : vector<2x32xf32>
    %cst_49 = arith.constant 1.000000e+00 : f32
    %98 = vector.broadcast %cst_49 : f32 to vector<2x32xf32>
    %99 = arith.addf %98, %97 : vector<2x32xf32>
    %100 = arith.divf %98, %99 : vector<2x32xf32>
    %101 = vector.extract_strided_slice %94 {offsets = [0, 64], sizes = [2, 32], strides = [1, 1]} : vector<2x128xf32> to vector<2x32xf32>
    %102 = math.tanh %101 : vector<2x32xf32>
    %103 = vector.extract_strided_slice %94 {offsets = [0, 96], sizes = [2, 32], strides = [1, 1]} : vector<2x128xf32> to vector<2x32xf32>
    %104 = arith.negf %103 : vector<2x32xf32>
    %105 = math.exp %104 : vector<2x32xf32>
    %cst_50 = arith.constant 1.000000e+00 : f32
    %106 = vector.broadcast %cst_50 : f32 to vector<2x32xf32>
    %107 = arith.addf %106, %105 : vector<2x32xf32>
    %108 = arith.divf %106, %107 : vector<2x32xf32>
    %109 = arith.mulf %100, %102 : vector<2x32xf32>
    %110 = math.tanh %109 : vector<2x32xf32>
    %111 = arith.mulf %108, %110 : vector<2x32xf32>
    %112 = tpu.concatenate %86, %111 in 1 : vector<2x32xf32>, vector<2x32xf32> -> vector<2x64xf32>
    %113 = arith.truncf %112 : vector<2x64xf32> to vector<2x64xbf16>
    %c0_51 = arith.constant 0 : index
    %c0_52 = arith.constant 0 : index
    %114 = vector.load %arg9[%c0_51, %c0_52] : memref<64x256xbf16, #tpu.memory_space<vmem>>, vector<64x256xbf16>
    %cst_53 = arith.constant dense<0.000000e+00> : vector<2x256xf32>
    %115 = tpu.matmul %113, %114, %cst_53 {dimension_numbers = #tpu.dot_dimension_numbers<[1], [0], [0], [1], [0, 0, 1, 1], [], []>} : vector<2x64xbf16>, vector<64x256xbf16>, vector<2x256xf32> -> vector<2x256xf32>
    %c0_54 = arith.constant 0 : index
    %c0_55 = arith.constant 0 : index
    %116 = vector.load %arg10[%c0_54, %c0_55] : memref<1x256xf32, #tpu.memory_space<vmem>>, vector<1x256xf32>
    %117 = vector.broadcast %116 : vector<1x256xf32> to vector<2x256xf32>
    %118 = arith.addf %115, %117 : vector<2x256xf32>
    %cst_56 = arith.constant 0.000000e+00 : f32
    %119 = vector.broadcast %cst_56 : f32 to vector<2x256xf32>
    %120 = arith.maximumf %118, %119 : vector<2x256xf32>
    %121 = arith.truncf %120 : vector<2x256xf32> to vector<2x256xbf16>
    %c0_57 = arith.constant 0 : index
    %c0_58 = arith.constant 0 : index
    %122 = vector.load %arg11[%c0_57, %c0_58] : memref<256x128xbf16, #tpu.memory_space<vmem>>, vector<256x128xbf16>
    %cst_59 = arith.constant dense<0.000000e+00> : vector<2x128xf32>
    %123 = tpu.matmul %121, %122, %cst_59 {dimension_numbers = #tpu.dot_dimension_numbers<[1], [0], [0], [1], [0, 0, 1, 1], [], []>} : vector<2x256xbf16>, vector<256x128xbf16>, vector<2x128xf32> -> vector<2x128xf32>
    %c0_60 = arith.constant 0 : index
    %c0_61 = arith.constant 0 : index
    %124 = vector.load %arg12[%c0_60, %c0_61] : memref<1x128xf32, #tpu.memory_space<vmem>>, vector<1x128xf32>
    %125 = vector.broadcast %124 : vector<1x128xf32> to vector<2x128xf32>
    %126 = arith.addf %123, %125 : vector<2x128xf32>
    %cst_62 = arith.constant 0.000000e+00 : f32
    %127 = vector.broadcast %cst_62 : f32 to vector<2x128xf32>
    %128 = arith.maximumf %126, %127 : vector<2x128xf32>
    %129 = arith.truncf %128 : vector<2x128xf32> to vector<2x128xbf16>
    %c0_63 = arith.constant 0 : index
    %c0_64 = arith.constant 0 : index
    %130 = vector.load %arg13[%c0_63, %c0_64] : memref<128x128xbf16, #tpu.memory_space<vmem>>, vector<128x128xbf16>
    %cst_65 = arith.constant dense<0.000000e+00> : vector<2x128xf32>
    %131 = tpu.matmul %129, %130, %cst_65 {dimension_numbers = #tpu.dot_dimension_numbers<[1], [0], [0], [1], [0, 0, 1, 1], [], []>} : vector<2x128xbf16>, vector<128x128xbf16>, vector<2x128xf32> -> vector<2x128xf32>
    %c0_66 = arith.constant 0 : index
    %c0_67 = arith.constant 0 : index
    %132 = vector.load %arg14[%c0_66, %c0_67] : memref<1x128xf32, #tpu.memory_space<vmem>>, vector<1x128xf32>
    %133 = vector.broadcast %132 : vector<1x128xf32> to vector<2x128xf32>
    %134 = arith.addf %131, %133 : vector<2x128xf32>
    %c0_68 = arith.constant 0 : index
    %c0_69 = arith.constant 0 : index
    %135 = vector.load %arg15[%c0_68, %c0_69] : memref<2x128xf32, #tpu.memory_space<vmem>>, vector<2x128xf32>
    tpu.vector_store %arg15[%c0_68, %c0_69], %134 {strides = array<i32>} : memref<2x128xf32, #tpu.memory_space<vmem>>, vector<2x128xf32>,
    return
  }
  func.func @transform_0(%arg0: i32) -> (i32, i32, i32) {
    %c0_i32 = arith.constant 0 : i32
    %c0_i32_0 = arith.constant 0 : i32
    %c0_i32_1 = arith.constant 0 : i32
    return %arg0, %c0_i32, %c0_i32_0 : i32, i32, i32
  }
  func.func @transform_1(%arg0: i32) -> (i32, i32, i32) {
    %c0_i32 = arith.constant 0 : i32
    %c0_i32_0 = arith.constant 0 : i32
    %c0_i32_1 = arith.constant 0 : i32
    %c0_i32_2 = arith.constant 0 : i32
    return %c0_i32, %c0_i32_0, %c0_i32_1 : i32, i32, i32
  }
  func.func @transform_2(%arg0: i32) -> (i32, i32, i32) {
    %c0_i32 = arith.constant 0 : i32
    %c0_i32_0 = arith.constant 0 : i32
    %c0_i32_1 = arith.constant 0 : i32
    %c0_i32_2 = arith.constant 0 : i32
    return %c0_i32, %c0_i32_0, %c0_i32_1 : i32, i32, i32
  }
  func.func @transform_3(%arg0: i32) -> (i32, i32) {
    %c0_i32 = arith.constant 0 : i32
    %c0_i32_0 = arith.constant 0 : i32
    %c0_i32_1 = arith.constant 0 : i32
    return %c0_i32, %c0_i32_0 : i32, i32
  }
  func.func @transform_4(%arg0: i32) -> (i32, i32) {
    %c0_i32 = arith.constant 0 : i32
    %c0_i32_0 = arith.constant 0 : i32
    %c0_i32_1 = arith.constant 0 : i32
    return %c0_i32, %c0_i32_0 : i32, i32
  }
  func.func @transform_5(%arg0: i32) -> (i32, i32) {
    %c0_i32 = arith.constant 0 : i32
    %c0_i32_0 = arith.constant 0 : i32
    %c0_i32_1 = arith.constant 0 : i32
    return %c0_i32, %c0_i32_0 : i32, i32
  }
  func.func @transform_6(%arg0: i32) -> (i32, i32) {
    %c0_i32 = arith.constant 0 : i32
    %c0_i32_0 = arith.constant 0 : i32
    %c0_i32_1 = arith.constant 0 : i32
    return %c0_i32, %c0_i32_0 : i32, i32
  }
  func.func @transform_7(%arg0: i32) -> (i32, i32) {
    %c0_i32 = arith.constant 0 : i32
    %c0_i32_0 = arith.constant 0 : i32
    %c0_i32_1 = arith.constant 0 : i32
    return %c0_i32, %c0_i32_0 : i32, i32
  }
  func.func @transform_8(%arg0: i32) -> (i32, i32) {
    %c0_i32 = arith.constant 0 : i32
    %c0_i32_0 = arith.constant 0 : i32
    %c0_i32_1 = arith.constant 0 : i32
    return %c0_i32, %c0_i32_0 : i32, i32
  }
  func.func @transform_9(%arg0: i32) -> (i32, i32) {
    %c0_i32 = arith.constant 0 : i32
    %c0_i32_0 = arith.constant 0 : i32
    %c0_i32_1 = arith.constant 0 : i32
    return %c0_i32, %c0_i32_0 : i32, i32
  }
  func.func @transform_10(%arg0: i32) -> (i32, i32) {
    %c0_i32 = arith.constant 0 : i32
    %c0_i32_0 = arith.constant 0 : i32
    %c0_i32_1 = arith.constant 0 : i32
    return %c0_i32, %c0_i32_0 : i32, i32
  }
  func.func @transform_11(%arg0: i32) -> (i32, i32) {
    %c0_i32 = arith.constant 0 : i32
    %c0_i32_0 = arith.constant 0 : i32
    %c0_i32_1 = arith.constant 0 : i32
    return %c0_i32, %c0_i32_0 : i32, i32
  }
  func.func @transform_12(%arg0: i32) -> (i32, i32) {
    %c0_i32 = arith.constant 0 : i32
    %c0_i32_0 = arith.constant 0 : i32
    %c0_i32_1 = arith.constant 0 : i32
    return %c0_i32, %c0_i32_0 : i32, i32
  }
  func.func @transform_13(%arg0: i32) -> (i32, i32) {
    %c0_i32 = arith.constant 0 : i32
    %c0_i32_0 = arith.constant 0 : i32
    %c0_i32_1 = arith.constant 0 : i32
    return %c0_i32, %c0_i32_0 : i32, i32
  }
  func.func @transform_14(%arg0: i32) -> (i32, i32) {
    %c0_i32 = arith.constant 0 : i32
    %c0_i32_0 = arith.constant 0 : i32
    return %arg0, %c0_i32 : i32, i32
  }
}

</mosaic_0001>

<llo_original>
// kernel: _lambda_.1
$region0: #{_lambda_.1}
  #allocation0 [shape = 'u32[]', space=smem, size = 0x4, offset = 0x4, fixed_abs, tag = 'smem constant byte address 0x4 - core index']
  #allocation1 [shape = 'u32[72,128]{1,0:T(1,128)}', space=vmem, size = 0x9000, scoped, tag = 'internal scratch']
  #allocation2 [shape = 'f32[2,10,128]{2,1,0:T(8,128)}', space=vmem, size = 0x4000, scoped, tag = 'scratch operand']
  %s0 = inlined_call_operand.vmem [shape: f32[2,8,128], index: 0, kind: input, shape index: {}]
  %s1 = inlined_call_operand.hbm [shape: bf16[7,128,128], index: 1, kind: input, shape index: {}]
  %s2 = inlined_call_operand.hbm [shape: f32[7,1,128], index: 2, kind: input, shape index: {}]
  %s3 = inlined_call_operand.hbm [shape: bf16[128,128], index: 3, kind: input, shape index: {}]
  %s4 = inlined_call_operand.hbm [shape: bf16[32,128], index: 4, kind: input, shape index: {}]
  %s5 = inlined_call_operand.hbm [shape: f32[1,128], index: 5, kind: input, shape index: {}]
  %s6 = inlined_call_operand.hbm [shape: bf16[128,128], index: 6, kind: input, shape index: {}]
  %s7 = inlined_call_operand.hbm [shape: f32[1,128], index: 7, kind: input, shape index: {}]
  %s8 = inlined_call_operand.hbm [shape: bf16[64,256], index: 8, kind: input, shape index: {}]
  %s9 = inlined_call_operand.vmem [shape: f32[1,256], index: 9, kind: input, shape index: {}]
  %s10 = inlined_call_operand.hbm [shape: bf16[256,128], index: 10, kind: input, shape index: {}]
  %s11 = inlined_call_operand.vmem [shape: f32[1,128], index: 11, kind: input, shape index: {}]
  %s12 = inlined_call_operand.vmem [shape: bf16[128,128], index: 12, kind: input, shape index: {}]
  %s13 = inlined_call_operand.vmem [shape: f32[1,128], index: 13, kind: input, shape index: {}]
  %s14 = inlined_call_operand.hbm [shape: f32[2,128], index: 14, kind: output, shape index: {}]
  %s15 = sld [smem:[#allocation0]]
  $region116: #{_lambda_.1} parent=0
    _
  %s17 = ssub.s32 1, %s15
  %s18 = scalar_select 0, %s17, %s15
  $region1: #{_lambda_.1} parent=0
    #allocation3 [shape = 'u8[229376]{0}', space=vmem, size = 0x38000, scoped, tag = 'input window, operand 1, single buffered']
    #allocation4 [shape = 's32[1]{0}', space=sflag, size = 0x4, scoped, tag = 'scoped memory for _lambda_.1']
    #allocation5 [shape = 's32[1]{0}', space=sflag, size = 0x4, scoped, tag = 'scoped memory for _lambda_.1']
    #allocation6 [shape = 'u8[3584]{0}', space=vmem, size = 0x1000, scoped, tag = 'input window, operand 2, single buffered']
    #allocation7 [shape = 's32[1]{0}', space=sflag, size = 0x4, scoped, tag = 'scoped memory for _lambda_.1']
    #allocation8 [shape = 'u8[32768]{0}', space=vmem, size = 0x8000, scoped, tag = 'input window, operand 3, single buffered']
    #allocation9 [shape = 'u8[8192]{0}', space=vmem, size = 0x2000, scoped, tag = 'input window, operand 4, single buffered']
    #allocation10 [shape = 's32[1]{0}', space=sflag, size = 0x4, scoped, tag = 'scoped memory for _lambda_.1']
    #allocation11 [shape = 'u8[512]{0}', space=vmem, size = 0x400, scoped, tag = 'input window, operand 5, single buffered']
    #allocation12 [shape = 'u8[32768]{0}', space=vmem, size = 0x8000, scoped, tag = 'input window, operand 6, single buffered']
    #allocation13 [shape = 's32[1]{0}', space=sflag, size = 0x4, scoped, tag = 'scoped memory for _lambda_.1']
    #allocation14 [shape = 'u8[512]{0}', space=vmem, size = 0x400, scoped, tag = 'input window, operand 7, single buffered']
    #allocation15 [shape = 'u8[32768]{0}', space=vmem, size = 0x8000, scoped, tag = 'input window, operand 8, single buffered']
    #allocation16 [shape = 's32[1]{0}', space=sflag, size = 0x4, scoped, tag = 'scoped memory for _lambda_.1']
    #allocation17 [shape = 'u8[65536]{0}', space=vmem, size = 0x10000, scoped, tag = 'input window, operand 10, single buffered']
    #allocation18 [shape = 'u8[1024]{0}', space=vmem, size = 0x400, scoped, tag = 'output window, operand 0, single buffered']
    %19 = vsyncpa [#allocation4], 0
    %20 = vsyncpa [#allocation7], 0
    %21 = vsyncpa [#allocation10], 0
    %22 = vsyncpa [#allocation13], 0
    %23 = vsyncpa [#allocation16], 0
    %24 = vsyncpa [#allocation5], 0
    // Predicated region
    $region2: #{_lambda_.1} parent=1 // pred_check
      _
    $region3: #{_lambda_.1} parent=1 // pred_check_branch
      %26 = sbr.rel (0) target = $region5
    $region4: #{_lambda_.1} parent=1 // pred_region
      _
    $region5: #{_lambda_.1} parent=1 // pred_fallthru
      _
    // Predicated region
    $region6: #{_lambda_.1} parent=1 // pred_check
      _
    $region7: #{_lambda_.1} parent=1 // pred_check_branch
      %28 = sbr.rel (0) target = $region9
    $region8: #{_lambda_.1} parent=1 // pred_region
      %30 = vsyncadd [#allocation4], 0
      %s31 = sshll.u32 %s1, 4
      %s32 = int_to_ptr.hbm [resolvable:$true] %s31
      %s33 = sshll.u32 [#allocation3], 4
      %s34 = int_to_ptr.vmem [resolvable:$true] %s33
      %39 = dma.hbm_to_vmem [thread:$0]  %s32, 7168, %s34, [#allocation4], 64, 64, 4
    $region9: #{_lambda_.1} parent=1 // pred_fallthru
      _
    // Predicated region
    $region10: #{_lambda_.1} parent=1 // pred_check
      _
    $region11: #{_lambda_.1} parent=1 // pred_check_branch
      %41 = sbr.rel (0) target = $region13
    $region12: #{_lambda_.1} parent=1 // pred_region
      %43 = vsyncadd [#allocation7], 0
      %s44 = sshll.u32 %s2, 4
      %s45 = int_to_ptr.hbm [resolvable:$true] %s44
      %s46 = sshll.u32 [#allocation6], 4
      %s47 = int_to_ptr.vmem [resolvable:$true] %s46
      %52 = dma.hbm_to_vmem [thread:$0]  %s45, 112, %s47, [#allocation7], 16, 16, 1
    $region13: #{_lambda_.1} parent=1 // pred_fallthru
      _
    // Predicated region
    $region14: #{_lambda_.1} parent=1 // pred_check
      _
    $region15: #{_lambda_.1} parent=1 // pred_check_branch
      %54 = sbr.rel (0) target = $region17
    $region16: #{_lambda_.1} parent=1 // pred_region
      %56 = vsyncadd [#allocation7], 0
      %s57 = sshll.u32 %s3, 4
      %s58 = int_to_ptr.hbm [resolvable:$true] %s57
      %s59 = sshll.u32 [#allocation8], 4
      %s60 = int_to_ptr.vmem [resolvable:$true] %s59
      %65 = dma.hbm_to_vmem [thread:$0]  %s58, 1024, %s60, [#allocation7], 64, 64, 4
    $region17: #{_lambda_.1} parent=1 // pred_fallthru
      _
    // Predicated region
    $region18: #{_lambda_.1} parent=1 // pred_check
      _
    $region19: #{_lambda_.1} parent=1 // pred_check_branch
      %67 = sbr.rel (0) target = $region21
    $region20: #{_lambda_.1} parent=1 // pred_region
      %69 = vsyncadd [#allocation10], 0
      %s70 = sshll.u32 %s4, 4
      %s71 = int_to_ptr.hbm [resolvable:$true] %s70
      %s72 = sshll.u32 [#allocation9], 4
      %s73 = int_to_ptr.vmem [resolvable:$true] %s72
      %78 = dma.hbm_to_vmem [thread:$0]  %s71, 256, %s73, [#allocation10], 64, 64, 4
    $region21: #{_lambda_.1} parent=1 // pred_fallthru
      _
    // Predicated region
    $region22: #{_lambda_.1} parent=1 // pred_check
      _
    $region23: #{_lambda_.1} parent=1 // pred_check_branch
      %80 = sbr.rel (0) target = $region25
    $region24: #{_lambda_.1} parent=1 // pred_region
      %82 = vsyncadd [#allocation10], 0
      %s84 = sshll.u32 %s5, 4
      %s85 = int_to_ptr.hbm [resolvable:$true] %s84
      %s86 = sshll.u32 [#allocation11], 4
      %s87 = int_to_ptr.vmem [resolvable:$true] %s86
      %89 = dma.hbm_to_vmem [thread:$0]  %s85, 16, %s87, [#allocation10]
    $region25: #{_lambda_.1} parent=1 // pred_fallthru
      _
    // Predicated region
    $region26: #{_lambda_.1} parent=1 // pred_check
      _
    $region27: #{_lambda_.1} parent=1 // pred_check_branch
      %91 = sbr.rel (0) target = $region29
    $region28: #{_lambda_.1} parent=1 // pred_region
      %93 = vsyncadd [#allocation13], 0
      %s94 = sshll.u32 %s6, 4
      %s95 = int_to_ptr.hbm [resolvable:$true] %s94
      %s96 = sshll.u32 [#allocation12], 4
      %s97 = int_to_ptr.vmem [resolvable:$true] %s96
      %102 = dma.hbm_to_vmem [thread:$0]  %s95, 1024, %s97, [#allocation13], 64, 64, 4
    $region29: #{_lambda_.1} parent=1 // pred_fallthru
      _
    // Predicated region
    $region30: #{_lambda_.1} parent=1 // pred_check
      _
    $region31: #{_lambda_.1} parent=1 // pred_check_branch
      %104 = sbr.rel (0) target = $region33
    $region32: #{_lambda_.1} parent=1 // pred_region
      %106 = vsyncadd [#allocation13], 0
      %s108 = sshll.u32 %s7, 4
      %s109 = int_to_ptr.hbm [resolvable:$true] %s108
      %s110 = sshll.u32 [#allocation14], 4
      %s111 = int_to_ptr.vmem [resolvable:$true] %s110
      %113 = dma.hbm_to_vmem [thread:$0]  %s109, 16, %s111, [#allocation13]
    $region33: #{_lambda_.1} parent=1 // pred_fallthru
      _
    // Predicated region
    $region34: #{_lambda_.1} parent=1 // pred_check
      _
    $region35: #{_lambda_.1} parent=1 // pred_check_branch
      %115 = sbr.rel (0) target = $region37
    $region36: #{_lambda_.1} parent=1 // pred_region
      %117 = vsyncadd [#allocation16], 0
      %s118 = sshll.u32 %s8, 4
      %s119 = int_to_ptr.hbm [resolvable:$true] %s118
      %s120 = sshll.u32 [#allocation15], 4
      %s121 = int_to_ptr.vmem [resolvable:$true] %s120
      %126 = dma.hbm_to_vmem [thread:$0]  %s119, 1024, %s121, [#allocation16], 128, 128, 8
    $region37: #{_lambda_.1} parent=1 // pred_fallthru
      _
    // Predicated region
    $region38: #{_lambda_.1} parent=1 // pred_check
      _
    $region39: #{_lambda_.1} parent=1 // pred_check_branch
      %128 = sbr.rel (0) target = $region41
    $region40: #{_lambda_.1} parent=1 // pred_region
      _
    $region41: #{_lambda_.1} parent=1 // pred_fallthru
      _
    // Predicated region
    $region42: #{_lambda_.1} parent=1 // pred_check
      _
    $region43: #{_lambda_.1} parent=1 // pred_check_branch
      %130 = sbr.rel (0) target = $region45
    $region44: #{_lambda_.1} parent=1 // pred_region
      %132 = vsyncadd [#allocation16], 0
      %s133 = sshll.u32 %s10, 4
      %s134 = int_to_ptr.hbm [resolvable:$true] %s133
      %s135 = sshll.u32 [#allocation17], 4
      %s136 = int_to_ptr.vmem [resolvable:$true] %s135
      %141 = dma.hbm_to_vmem [thread:$0]  %s134, 2048, %s136, [#allocation16], 64, 64, 4
    $region45: #{_lambda_.1} parent=1 // pred_fallthru
      _
    // Predicated region
    $region46: #{_lambda_.1} parent=1 // pred_check
      _
    $region47: #{_lambda_.1} parent=1 // pred_check_branch
      %143 = sbr.rel (0) target = $region49
    $region48: #{_lambda_.1} parent=1 // pred_region
      _
    $region49: #{_lambda_.1} parent=1 // pred_fallthru
      _
    // Predicated region
    $region50: #{_lambda_.1} parent=1 // pred_check
      _
    $region51: #{_lambda_.1} parent=1 // pred_check_branch
      %145 = sbr.rel (0) target = $region53
    $region52: #{_lambda_.1} parent=1 // pred_region
      _
    $region53: #{_lambda_.1} parent=1 // pred_fallthru
      _
    // Predicated region
    $region54: #{_lambda_.1} parent=1 // pred_check
      _
    $region55: #{_lambda_.1} parent=1 // pred_check_branch
      %147 = sbr.rel (0) target = $region57
    $region56: #{_lambda_.1} parent=1 // pred_region
      _
    $region57: #{_lambda_.1} parent=1 // pred_fallthru
      _
    // Predicated region
    $region58: #{_lambda_.1} parent=1 // pred_check
      _
    $region59: #{_lambda_.1} parent=1 // pred_check_branch
      %149 = sbr.rel (0) target = $region61
    $region60: #{_lambda_.1} parent=1 // pred_region
      %151 = dma.done [#allocation4], 7168
    $region61: #{_lambda_.1} parent=1 // pred_fallthru
      _
    // Predicated region
    $region62: #{_lambda_.1} parent=1 // pred_check
      _
    $region63: #{_lambda_.1} parent=1 // pred_check_branch
      %153 = sbr.rel (0) target = $region65
    $region64: #{_lambda_.1} parent=1 // pred_region
      %155 = dma.done [#allocation7], 112
    $region65: #{_lambda_.1} parent=1 // pred_fallthru
      _
    // Predicated region
    $region66: #{_lambda_.1} parent=1 // pred_check
      _
    $region67: #{_lambda_.1} parent=1 // pred_check_branch
      %157 = sbr.rel (0) target = $region69
    $region68: #{_lambda_.1} parent=1 // pred_region
      %159 = dma.done [#allocation7], 1024
    $region69: #{_lambda_.1} parent=1 // pred_fallthru
      _
    // Predicated region
    $region70: #{_lambda_.1} parent=1 // pred_check
      _
    $region71: #{_lambda_.1} parent=1 // pred_check_branch
      %161 = sbr.rel (0) target = $region73
    $region72: #{_lambda_.1} parent=1 // pred_region
      %163 = dma.done [#allocation10], 256
    $region73: #{_lambda_.1} parent=1 // pred_fallthru
      _
    // Predicated region
    $region74: #{_lambda_.1} parent=1 // pred_check
      _
    $region75: #{_lambda_.1} parent=1 // pred_check_branch
      %165 = sbr.rel (0) target = $region77
    $region76: #{_lambda_.1} parent=1 // pred_region
      %167 = dma.done [#allocation10], 16
    $region77: #{_lambda_.1} parent=1 // pred_fallthru
      _
    // Predicated region
    $region78: #{_lambda_.1} parent=1 // pred_check
      _
    $region79: #{_lambda_.1} parent=1 // pred_check_branch
      %169 = sbr.rel (0) target = $region81
    $region80: #{_lambda_.1} parent=1 // pred_region
      %171 = dma.done [#allocation13], 1024
    $region81: #{_lambda_.1} parent=1 // pred_fallthru
      _
    // Predicated region
    $region82: #{_lambda_.1} parent=1 // pred_check
      _
    $region83: #{_lambda_.1} parent=1 // pred_check_branch
      %173 = sbr.rel (0) target = $region85
    $region84: #{_lambda_.1} parent=1 // pred_region
      %175 = dma.done [#allocation13], 16
    $region85: #{_lambda_.1} parent=1 // pred_fallthru
      _
    // Predicated region
    $region86: #{_lambda_.1} parent=1 // pred_check
      _
    $region87: #{_lambda_.1} parent=1 // pred_check_branch
      %177 = sbr.rel (0) target = $region89
    $region88: #{_lambda_.1} parent=1 // pred_region
      %179 = dma.done [#allocation16], 1024
    $region89: #{_lambda_.1} parent=1 // pred_fallthru
      _
    // Predicated region
    $region90: #{_lambda_.1} parent=1 // pred_check
      _
    $region91: #{_lambda_.1} parent=1 // pred_check_branch
      %181 = sbr.rel (0) target = $region93
    $region92: #{_lambda_.1} parent=1 // pred_region
      %183 = dma.done [#allocation16], 2048
    $region93: #{_lambda_.1} parent=1 // pred_fallthru
      _
    %185 = vst [vmem:[#allocation2] sm:$0xff] 0.0
    %186 = vst [vmem:[#allocation2 + $0x8] sm:$0x3] 0.0
    %187 = vst [vmem:[#allocation2 + $0x10] sm:$0xff] 0.0
    %188 = vst [vmem:[#allocation2 + $0x18] sm:$0x3] 0.0
    %v189 = vld [vmem:[%s0] sm:$0xff]
    %v190 = vld [vmem:[%s0 + $0x8] sm:$0xff]
    %191 = vst [vmem:[#allocation2 + $0x1] sm:$0xff] %v189
    %192 = vst [vmem:[#allocation2 + $0x11] sm:$0xff] %v190
    loop: start=0, step=1, limit=4
    $region94: #{_lambda_.1} parent=1 // loop_pre_header
      _
    $region95: #{_lambda_.1} parent=1 // loop_header
      %s194 = sphi 0, %s198
      %p195 = scmp.ge.s32.totalorder %s194, 4
    $region96: #{_lambda_.1} parent=1 // loop_header_branch
      %197 = sbr.rel (%p195) target = $region100
    $region97: #{_lambda_.1} parent=1 // loop_body
      %s199 = smul.u32 %s194, 16
      %s200 = smul.addr %s199, 4
      %s201 = scalar_lea.vmem [#allocation3], %s200
      %v202 = vld [vmem:[%s201] sm:$0xf]
      %v203 = vld [vmem:[%s201 + $0x4] sm:$0xf]
      %v204 = vld [vmem:[%s201 + $0x8] sm:$0xf]
      %v205 = vld [vmem:[%s201 + $0xc] sm:$0xf]
      %v206 = vld [vmem:[%s201 + $0x10] sm:$0xf]
      %v207 = vld [vmem:[%s201 + $0x14] sm:$0xf]
      %v208 = vld [vmem:[%s201 + $0x18] sm:$0xf]
      %v209 = vld [vmem:[%s201 + $0x1c] sm:$0xf]
      %v210 = vld [vmem:[%s201 + $0x20] sm:$0xf]
      %v211 = vld [vmem:[%s201 + $0x24] sm:$0xf]
      %v212 = vld [vmem:[%s201 + $0x28] sm:$0xf]
      %v213 = vld [vmem:[%s201 + $0x2c] sm:$0xf]
      %v214 = vld [vmem:[%s201 + $0x30] sm:$0xf]
      %v215 = vld [vmem:[%s201 + $0x34] sm:$0xf]
      %v216 = vld [vmem:[%s201 + $0x38] sm:$0xf]
      %v217 = vld [vmem:[%s201 + $0x3c] sm:$0xf]
      %s218 = scalar_lea.vmem [#allocation6], %s194
      %v219 = vld [vmem:[%s218] sm:$0x1]
      %v220 = vld [vmem:[#allocation2] sm:$0xff]
      %v221 = vld [vmem:[#allocation2 + $0x8] sm:$0x3]
      %v222 = vld [vmem:[#allocation2 + $0x10] sm:$0xff]
      %v223 = vld [vmem:[#allocation2 + $0x18] sm:$0x3]
      %v228 = vrot.slane %v220, 2
      %v229 = vrot.slane %v220, 4
      %v230 = vrot.slane %v220, 6
      %v231 = vrot.slane %v222, 2
      %v232 = vrot.slane %v222, 4
      %v233 = vrot.slane %v222, 6
      %234 = vst [vmem:[#allocation1] ss:$4 sm:$0xff] %v220
      %s235 = scalar_lea.vmem [#allocation1], 1
      %236 = vst [vmem:[%s235] ss:$4 sm:$0xff] %v228
      %s237 = scalar_lea.vmem [#allocation1], 2
      %238 = vst [vmem:[%s237] ss:$4 sm:$0xff] %v229
      %s239 = scalar_lea.vmem [#allocation1], 3
      %240 = vst [vmem:[%s239] ss:$4 sm:$0xff] %v230
      %s241 = scalar_lea.vmem [#allocation1], 32
      %242 = vst [vmem:[%s241] ss:$4 sm:$0xff] %v221
      %s243 = scalar_lea.vmem [#allocation1], 33
      %244 = vst [vmem:[%s243] ss:$4 sm:$0xff] %v222
      %s245 = scalar_lea.vmem [#allocation1], 34
      %246 = vst [vmem:[%s245] ss:$4 sm:$0xff] %v231
      %s247 = scalar_lea.vmem [#allocation1], 35
      %248 = vst [vmem:[%s247] ss:$4 sm:$0xff] %v232
      %v249 = vld.sshfl [vmem:[#allocation1] sm:$0xff pattern:$0x73625140]
      %v250 = vld.sshfl [vmem:[#allocation1 + $0x20] sm:$0xff pattern:$0x73625140]
      %251 = vst [vmem:[#allocation1] ss:$4 sm:$0xff] %v233
      %252 = vst [vmem:[%s235] ss:$4 sm:$0xff] %v223
      %v253 = vld.sshfl [vmem:[#allocation1] sm:$0xff pattern:$0x73625140]
      %257 = vrot.lane.b32.xlu0 %v249, 32
      %v258 = vpop.permute.xlu0 %257
      %259 = vrot.lane.b32.xlu0 %v250, 32
      %v260 = vpop.permute.xlu0 %259
      %261 = vrot.lane.b32.xlu0 %v253, 32
      %v262 = vpop.permute.xlu0 %261
      %v266 = vrot.slane %v258, 2
      %v267 = vrot.slane %v258, 4
      %v268 = vrot.slane %v258, 6
      %v269 = vrot.slane %v260, 2
      %v270 = vrot.slane %v260, 4
      %v271 = vrot.slane %v260, 6
      %v272 = vrot.slane %v262, 2
      %273 = vst [vmem:[#allocation1] ss:$4 sm:$0xff] %v220
      %s274 = scalar_lea.vmem [#allocation1], 1
      %275 = vst [vmem:[%s274] ss:$4 sm:$0xff] %v228
      %s276 = scalar_lea.vmem [#allocation1], 2
      %277 = vst [vmem:[%s276] ss:$4 sm:$0xff] %v229
      %s278 = scalar_lea.vmem [#allocation1], 3
      %279 = vst [vmem:[%s278] ss:$4 sm:$0xff] %v230
      %s280 = scalar_lea.vmem [#allocation1], 32
      %281 = vst [vmem:[%s280] ss:$4 sm:$0xff] %v221
      %s282 = scalar_lea.vmem [#allocation1], 33
      %283 = vst [vmem:[%s282] ss:$4 sm:$0xff] %v222
      %s284 = scalar_lea.vmem [#allocation1], 34
      %285 = vst [vmem:[%s284] ss:$4 sm:$0xff] %v231
      %s286 = scalar_lea.vmem [#allocation1], 35
      %287 = vst [vmem:[%s286] ss:$4 sm:$0xff] %v232
      %v288 = vld.sshfl [vmem:[#allocation1] sm:$0xff pattern:$0x73625140]
      %v289 = vld.sshfl [vmem:[#allocation1 + $0x20] sm:$0xff pattern:$0x73625140]
      %290 = vst [vmem:[#allocation1] ss:$4 sm:$0xff] %v233
      %291 = vst [vmem:[%s274] ss:$4 sm:$0xff] %v223
      %v292 = vld.sshfl [vmem:[#allocation1] sm:$0xff pattern:$0x73625140]
      %296 = vrot.lane.b32.xlu0 %v288, 64
      %v297 = vpop.permute.xlu0 %296
      %298 = vrot.lane.b32.xlu0 %v289, 64
      %v299 = vpop.permute.xlu0 %298
      %300 = vrot.lane.b32.xlu0 %v292, 64
      %v301 = vpop.permute.xlu0 %300
      %v305 = vrot.slane %v297, 2
      %v306 = vrot.slane %v297, 4
      %v307 = vrot.slane %v297, 6
      %v308 = vrot.slane %v299, 4
      %v309 = vrot.slane %v299, 6
      %v310 = vrot.slane %v301, 2
      %311 = vst [vmem:[#allocation1] ss:$4 sm:$0xff] %v258
      %s312 = scalar_lea.vmem [#allocation1], 1
      %313 = vst [vmem:[%s312] ss:$4 sm:$0xff] %v266
      %s314 = scalar_lea.vmem [#allocation1], 2
      %315 = vst [vmem:[%s314] ss:$4 sm:$0xff] %v267
      %s316 = scalar_lea.vmem [#allocation1], 3
      %317 = vst [vmem:[%s316] ss:$4 sm:$0xff] %v268
      %s318 = scalar_lea.vmem [#allocation1], 32
      %319 = vst [vmem:[%s318] ss:$4 sm:$0xff] %v260
      %v320 = vld.sshfl [vmem:[#allocation1] sm:$0xff pattern:$0x73625140]
      %v321 = vld.sshfl [vmem:[#allocation1 + $0x20] sm:$0xff pattern:$0x73625140]
      %322 = vst [vmem:[#allocation1] ss:$4 sm:$0xff] %v269
      %323 = vst [vmem:[%s312] ss:$4 sm:$0xff] %v270
      %324 = vst [vmem:[%s314] ss:$4 sm:$0xff] %v271
      %325 = vst [vmem:[%s316] ss:$4 sm:$0xff] %v262
      %326 = vst [vmem:[%s318] ss:$4 sm:$0xff] %v272
      %v327 = vld.sshfl [vmem:[#allocation1] sm:$0xff pattern:$0x73625140]
      %v328 = vld.sshfl [vmem:[#allocation1 + $0x20] sm:$0xff pattern:$0x73625140]
      %vm329 = vcmask 1046528
      %v330 = vrot.slane %v320, 1
      %v331 = vrot.slane %v321, 1
      %v332 = vsel %vm329, %v330, %v331
      %v333 = vrot.slane %v327, 1
      %v334 = vrot.slane %v328, 1
      %v335 = vsel %vm329, %v333, %v334
      %v338 = vadd.f32 %v220, %v332
      %v339 = vadd.f32 %v222, %v335
      %340 = vst [vmem:[#allocation1] ss:$4 sm:$0xff] %v305
      %s341 = scalar_lea.vmem [#allocation1], 1
      %342 = vst [vmem:[%s341] ss:$4 sm:$0xff] %v306
      %s343 = scalar_lea.vmem [#allocation1], 2
      %344 = vst [vmem:[%s343] ss:$4 sm:$0xff] %v307
      %s345 = scalar_lea.vmem [#allocation1], 3
      %346 = vst [vmem:[%s345] ss:$4 sm:$0xff] %v299
      %v347 = vld.sshfl [vmem:[#allocation1] sm:$0xff pattern:$0x73625140]
      %s348 = scalar_lea.vmem [#allocation1], 32
      %349 = vst [vmem:[%s348] ss:$4 sm:$0xff] %v308
      %s350 = scalar_lea.vmem [#allocation1], 33
      %351 = vst [vmem:[%s350] ss:$4 sm:$0xff] %v309
      %s352 = scalar_lea.vmem [#allocation1], 34
      %353 = vst [vmem:[%s352] ss:$4 sm:$0xff] %v301
      %s354 = scalar_lea.vmem [#allocation1], 35
      %355 = vst [vmem:[%s354] ss:$4 sm:$0xff] %v310
      %v356 = vld.sshfl [vmem:[#allocation1 + $0x20] sm:$0xff pattern:$0x73625140]
      %v359 = vadd.f32 %v338, %v347
      %v360 = vadd.f32 %v339, %v356
      %v361 = vpack.c.bf16 %v360, %v359
      %v363 = vperm.slane %v219, 0
      %v381 = vunpack.c.l.b16 %v202
      %v382 = vunpack.c.l.b16 %v203
      %v383 = vunpack.c.l.b16 %v204
      %v384 = vunpack.c.l.b16 %v205
      %v385 = vunpack.c.l.b16 %v206
      %v386 = vunpack.c.l.b16 %v207
      %v387 = vunpack.c.l.b16 %v208
      %v388 = vunpack.c.l.b16 %v209
      %v389 = vunpack.c.l.b16 %v210
      %v390 = vunpack.c.l.b16 %v211
      %v391 = vunpack.c.l.b16 %v212
      %v392 = vunpack.c.l.b16 %v213
      %v393 = vunpack.c.l.b16 %v214
      %v394 = vunpack.c.l.b16 %v215
      %v395 = vunpack.c.l.b16 %v216
      %v396 = vunpack.c.l.b16 %v217
      %v397 = vpack.c.b16 %v382, %v381
      %v398 = vpack.c.b16 %v384, %v383
      %v399 = vpack.c.b16 %v386, %v385
      %v400 = vpack.c.b16 %v388, %v387
      %v401 = vpack.c.b16 %v390, %v389
      %v402 = vpack.c.b16 %v392, %v391
      %v403 = vpack.c.b16 %v394, %v393
      %v404 = vpack.c.b16 %v396, %v395
      %413 = vmatpush.bf16.msra.mxu0 %v404
      %414 = vmatpush.bf16.msra.mxu0 %v403
      %415 = vmatpush.bf16.msra.mxu0 %v402
      %416 = vmatpush.bf16.msra.mxu0 %v401
      %417 = vmatpush.bf16.msra.mxu0 %v400
      %418 = vmatpush.bf16.msra.mxu0 %v399
      %419 = vmatpush.bf16.msra.mxu0 %v398
      %420 = vmatpush.bf16.msra.mxu0 %v397
      %421 = vmatmul.bf16.gmra.mxu0 %v361
      %v422 = vpop.f32.mrf.mxu0
      %v423 = vadd.f32 %v363, %v422
      %v424 = vpop.f32.mrf.mxu0
      %v425 = vadd.f32 %v363, %v424
      %426 = vdwg.mxu0
      %v427 = vmax.f32 %v423, 0.0
      %v428 = vmax.f32 %v425, 0.0
      %429 = vst [vmem:[#allocation2 + $0x1] sm:$0xff] %v427
      %430 = vst [vmem:[#allocation2 + $0x11] sm:$0xff] %v428
    $region98: #{_lambda_.1} parent=1 // loop_footer
      %s198 = sadd.s32 1, %s194
    $region99: #{_lambda_.1} parent=1 // loop_footer_branch
      %193 = sbr.rel target = $region95
    $region100: #{_lambda_.1} parent=1 // loop_exit
      _
    %v431 = vld [vmem:[#allocation2 + $0x1] sm:$0xff]
    %v432 = vld [vmem:[#allocation2 + $0x11] sm:$0xff]
    %v435 = vrot.slane %v431, 2
    %v436 = vrot.slane %v431, 4
    %v437 = vrot.slane %v431, 6
    %v438 = vrot.slane %v432, 2
    %v439 = vrot.slane %v432, 4
    %v440 = vrot.slane %v432, 6
    %vm447 = vcmask 1041408
    %v448 = vsel %vm447, %v431, -inf
    %v449 = vrot.slane %v448, 4
    %v450 = vmax.f32 %v448, %v449
    %v451 = vrot.slane %v450, 2
    %v452 = vmax.f32 %v450, %v451
    %v453 = vrot.slane %v452, 1
    %v454 = vmax.f32 %v452, %v453
    %v455 = vsel %vm447, %v435, -inf
    %v456 = vrot.slane %v455, 4
    %v457 = vmax.f32 %v455, %v456
    %v458 = vrot.slane %v457, 2
    %v459 = vmax.f32 %v457, %v458
    %v460 = vrot.slane %v459, 1
    %v461 = vmax.f32 %v459, %v460
    %v462 = vsel %vm447, %v436, -inf
    %v463 = vrot.slane %v462, 4
    %v464 = vmax.f32 %v462, %v463
    %v465 = vrot.slane %v464, 2
    %v466 = vmax.f32 %v464, %v465
    %v467 = vrot.slane %v466, 1
    %v468 = vmax.f32 %v466, %v467
    %v469 = vsel %vm447, %v437, -inf
    %v470 = vrot.slane %v469, 4
    %v471 = vmax.f32 %v469, %v470
    %v472 = vrot.slane %v471, 2
    %v473 = vmax.f32 %v471, %v472
    %v474 = vrot.slane %v473, 1
    %v475 = vmax.f32 %v473, %v474
    %v476 = vsel %vm447, %v432, -inf
    %v477 = vrot.slane %v476, 4
    %v478 = vmax.f32 %v476, %v477
    %v479 = vrot.slane %v478, 2
    %v480 = vmax.f32 %v478, %v479
    %v481 = vrot.slane %v480, 1
    %v482 = vmax.f32 %v480, %v481
    %v483 = vsel %vm447, %v438, -inf
    %v484 = vrot.slane %v483, 4
    %v485 = vmax.f32 %v483, %v484
    %v486 = vrot.slane %v485, 2
    %v487 = vmax.f32 %v485, %v486
    %v488 = vrot.slane %v487, 1
    %v489 = vmax.f32 %v487, %v488
    %v490 = vsel %vm447, %v439, -inf
    %v491 = vrot.slane %v490, 4
    %v492 = vmax.f32 %v490, %v491
    %v493 = vrot.slane %v492, 2
    %v494 = vmax.f32 %v492, %v493
    %v495 = vrot.slane %v494, 1
    %v496 = vmax.f32 %v494, %v495
    %v497 = vsel %vm447, %v440, -inf
    %v498 = vrot.slane %v497, 4
    %v499 = vmax.f32 %v497, %v498
    %v500 = vrot.slane %v499, 2
    %v501 = vmax.f32 %v499, %v500
    %v502 = vrot.slane %v501, 1
    %v503 = vmax.f32 %v501, %v502
    %vm512 = vcmask 1041409
    %v513 = vsel %vm512, %v461, %v454
    %vm514 = vcmask 1042434
    %v515 = vsel %vm514, %v468, %v513
    %vm516 = vcmask 1043459
    %v517 = vsel %vm516, %v475, %v515
    %v518 = vsel %vm512, %v489, %v482
    %v519 = vsel %vm514, %v496, %v518
    %v520 = vsel %vm516, %v503, %v519
    %523 = vst [vmem:[#allocation2 + $0x1] sm:$0xf] %v517
    %524 = vst [vmem:[#allocation2 + $0x11] sm:$0xf] %v520
    %525 = vst [vmem:[#allocation2 + $0x5] sm:$0x1f] 0.0
    %526 = vst [vmem:[#allocation2 + $0x15] sm:$0x1f] 0.0
    loop: start=4, step=1, limit=7
    $region101: #{_lambda_.1} parent=1 // loop_pre_header
      _
    $region102: #{_lambda_.1} parent=1 // loop_header
      %s528 = sphi 4, %s532
      %p529 = scmp.ge.s32.totalorder %s528, 7
    $region103: #{_lambda_.1} parent=1 // loop_header_branch
      %531 = sbr.rel (%p529) target = $region107
    $region104: #{_lambda_.1} parent=1 // loop_body
      %s533 = smul.u32 %s528, 16
      %s534 = smul.addr %s533, 4
      %s535 = scalar_lea.vmem [#allocation3], %s534
      %v536 = vld [vmem:[%s535] sm:$0xf]
      %v537 = vld [vmem:[%s535 + $0x4] sm:$0xf]
      %v538 = vld [vmem:[%s535 + $0x8] sm:$0xf]
      %v539 = vld [vmem:[%s535 + $0xc] sm:$0xf]
      %v540 = vld [vmem:[%s535 + $0x10] sm:$0xf]
      %v541 = vld [vmem:[%s535 + $0x14] sm:$0xf]
      %v542 = vld [vmem:[%s535 + $0x18] sm:$0xf]
      %v543 = vld [vmem:[%s535 + $0x1c] sm:$0xf]
      %v544 = vld [vmem:[%s535 + $0x20] sm:$0xf]
      %v545 = vld [vmem:[%s535 + $0x24] sm:$0xf]
      %v546 = vld [vmem:[%s535 + $0x28] sm:$0xf]
      %v547 = vld [vmem:[%s535 + $0x2c] sm:$0xf]
      %v548 = vld [vmem:[%s535 + $0x30] sm:$0xf]
      %v549 = vld [vmem:[%s535 + $0x34] sm:$0xf]
      %v550 = vld [vmem:[%s535 + $0x38] sm:$0xf]
      %v551 = vld [vmem:[%s535 + $0x3c] sm:$0xf]
      %s552 = scalar_lea.vmem [#allocation6], %s528
      %v553 = vld [vmem:[%s552] sm:$0x1]
      %v554 = vld [vmem:[#allocation2] sm:$0x3f]
      %v555 = vld [vmem:[#allocation2 + $0x10] sm:$0x3f]
      %v558 = vrot.slane %v554, 2
      %v559 = vrot.slane %v554, 4
      %v560 = vrot.slane %v555, 2
      %v561 = vrot.slane %v555, 4
      %562 = vst [vmem:[#allocation1] ss:$4 sm:$0xff] %v554
      %s563 = scalar_lea.vmem [#allocation1], 1
      %564 = vst [vmem:[%s563] ss:$4 sm:$0xff] %v558
      %s565 = scalar_lea.vmem [#allocation1], 2
      %566 = vst [vmem:[%s565] ss:$4 sm:$0xff] %v559
      %s567 = scalar_lea.vmem [#allocation1], 3
      %568 = vst [vmem:[%s567] ss:$4 sm:$0xff] %v555
      %s569 = scalar_lea.vmem [#allocation1], 32
      %570 = vst [vmem:[%s569] ss:$4 sm:$0xff] %v560
      %s571 = scalar_lea.vmem [#allocation1], 33
      %572 = vst [vmem:[%s571] ss:$4 sm:$0xff] %v561
      %v573 = vld.sshfl [vmem:[#allocation1] sm:$0xff pattern:$0x73625140]
      %v574 = vld.sshfl [vmem:[#allocation1 + $0x20] sm:$0xff pattern:$0x73625140]
      %577 = vrot.lane.b32.xlu0 %v573, 32
      %v578 = vpop.permute.xlu0 %577
      %579 = vrot.lane.b32.xlu0 %v574, 32
      %v580 = vpop.permute.xlu0 %579
      %v583 = vrot.slane %v578, 2
      %v584 = vrot.slane %v578, 4
      %v585 = vrot.slane %v578, 6
      %v586 = vrot.slane %v580, 2
      %587 = vst [vmem:[#allocation1] ss:$4 sm:$0xff] %v554
      %s588 = scalar_lea.vmem [#allocation1], 1
      %589 = vst [vmem:[%s588] ss:$4 sm:$0xff] %v558
      %s590 = scalar_lea.vmem [#allocation1], 2
      %591 = vst [vmem:[%s590] ss:$4 sm:$0xff] %v559
      %s592 = scalar_lea.vmem [#allocation1], 3
      %593 = vst [vmem:[%s592] ss:$4 sm:$0xff] %v555
      %s594 = scalar_lea.vmem [#allocation1], 32
      %595 = vst [vmem:[%s594] ss:$4 sm:$0xff] %v560
      %s596 = scalar_lea.vmem [#allocation1], 33
      %597 = vst [vmem:[%s596] ss:$4 sm:$0xff] %v561
      %v598 = vld.sshfl [vmem:[#allocation1] sm:$0xff pattern:$0x73625140]
      %v599 = vld.sshfl [vmem:[#allocation1 + $0x20] sm:$0xff pattern:$0x73625140]
      %602 = vrot.lane.b32.xlu0 %v598, 64
      %v603 = vpop.permute.xlu0 %602
      %604 = vrot.lane.b32.xlu0 %v599, 64
      %v605 = vpop.permute.xlu0 %604
      %v608 = vrot.slane %v603, 2
      %v609 = vrot.slane %v603, 4
      %v610 = vrot.slane %v605, 2
      %611 = vst [vmem:[#allocation1] ss:$4 sm:$0xff] %v578
      %s612 = scalar_lea.vmem [#allocation1], 1
      %613 = vst [vmem:[%s612] ss:$4 sm:$0xff] %v583
      %s614 = scalar_lea.vmem [#allocation1], 2
      %615 = vst [vmem:[%s614] ss:$4 sm:$0xff] %v584
      %v616 = vld.sshfl [vmem:[#allocation1] sm:$0xff pattern:$0x73625140]
      %s617 = scalar_lea.vmem [#allocation1], 32
      %618 = vst [vmem:[%s617] ss:$4 sm:$0xff] %v585
      %s619 = scalar_lea.vmem [#allocation1], 33
      %620 = vst [vmem:[%s619] ss:$4 sm:$0xff] %v580
      %s621 = scalar_lea.vmem [#allocation1], 34
      %622 = vst [vmem:[%s621] ss:$4 sm:$0xff] %v586
      %v623 = vld.sshfl [vmem:[#allocation1 + $0x20] sm:$0xff pattern:$0x73625140]
      %v624 = vrot.slane %v616, 1
      %v625 = vrot.slane %v623, 1
      %v628 = vadd.f32 %v554, %v624
      %v629 = vadd.f32 %v555, %v625
      %630 = vst [vmem:[#allocation1] ss:$4 sm:$0xff] %v608
      %s631 = scalar_lea.vmem [#allocation1], 1
      %632 = vst [vmem:[%s631] ss:$4 sm:$0xff] %v609
      %v633 = vld.sshfl [vmem:[#allocation1] sm:$0xff pattern:$0x73625140]
      %s634 = scalar_lea.vmem [#allocation1], 32
      %635 = vst [vmem:[%s634] ss:$4 sm:$0xff] %v605
      %s636 = scalar_lea.vmem [#allocation1], 33
      %637 = vst [vmem:[%s636] ss:$4 sm:$0xff] %v610
      %v638 = vld.sshfl [vmem:[#allocation1 + $0x20] sm:$0xff pattern:$0x73625140]
      %v641 = vadd.f32 %v628, %v633
      %v642 = vadd.f32 %v629, %v638
      %645 = vst [vmem:[#allocation1] ss:$2 sm:$0xff] %v641
      %s646 = scalar_lea.vmem [#allocation1], 1
      %647 = vst [vmem:[%s646] ss:$2 sm:$0xff] %v642
      %v648 = vld.sshfl [vmem:[#allocation1] sm:$0xff pattern:$0x75316420]
      %v650 = vpack.c.bf16 %v648, %v648
      %v652 = vperm.slane %v553, 0
      %v670 = vunpack.c.l.b16 %v536
      %v671 = vunpack.c.l.b16 %v537
      %v672 = vunpack.c.l.b16 %v538
      %v673 = vunpack.c.l.b16 %v539
      %v674 = vunpack.c.l.b16 %v540
      %v675 = vunpack.c.l.b16 %v541
      %v676 = vunpack.c.l.b16 %v542
      %v677 = vunpack.c.l.b16 %v543
      %v678 = vunpack.c.l.b16 %v544
      %v679 = vunpack.c.l.b16 %v545
      %v680 = vunpack.c.l.b16 %v546
      %v681 = vunpack.c.l.b16 %v547
      %v682 = vunpack.c.l.b16 %v548
      %v683 = vunpack.c.l.b16 %v549
      %v684 = vunpack.c.l.b16 %v550
      %v685 = vunpack.c.l.b16 %v551
      %v686 = vpack.c.b16 %v671, %v670
      %v687 = vpack.c.b16 %v673, %v672
      %v688 = vpack.c.b16 %v675, %v674
      %v689 = vpack.c.b16 %v677, %v676
      %v690 = vpack.c.b16 %v679, %v678
      %v691 = vpack.c.b16 %v681, %v680
      %v692 = vpack.c.b16 %v683, %v682
      %v693 = vpack.c.b16 %v685, %v684
      %702 = vmatpush.bf16.msra.mxu0 %v693
      %703 = vmatpush.bf16.msra.mxu0 %v692
      %704 = vmatpush.bf16.msra.mxu0 %v691
      %705 = vmatpush.bf16.msra.mxu0 %v690
      %706 = vmatpush.bf16.msra.mxu0 %v689
      %707 = vmatpush.bf16.msra.mxu0 %v688
      %708 = vmatpush.bf16.msra.mxu0 %v687
      %709 = vmatpush.bf16.msra.mxu0 %v686
      %710 = vmatmul.bf16.gmra.mxu0 %v650
      %v711 = vpop.f32.mrf.mxu0
      %v712 = vadd.f32 %v652, %v711
      %v713 = vpop.f32.mrf.mxu0
      %714 = vdwg.mxu0
      %v715 = vmax.f32 %v712, 0.0
      %v717 = vrot.slane %v715, 4
      %719 = vst [vmem:[#allocation2 + $0x1] sm:$0xf] %v715
      %720 = vst [vmem:[#allocation2 + $0x11] sm:$0xf] %v717
    $region105: #{_lambda_.1} parent=1 // loop_footer
      %s532 = sadd.s32 1, %s528
    $region106: #{_lambda_.1} parent=1 // loop_footer_branch
      %527 = sbr.rel target = $region102
    $region107: #{_lambda_.1} parent=1 // loop_exit
      _
    %v721 = vld [vmem:[#allocation2 + $0x1] sm:$0xf]
    %v722 = vld [vmem:[#allocation2 + $0x11] sm:$0xf]
    %v725 = vrot.slane %v721, 2
    %v726 = vrot.slane %v722, 2
    %v729 = vsel %vm447, %v721, -inf
    %v730 = vrot.slane %v729, 4
    %v731 = vmax.f32 %v729, %v730
    %v732 = vrot.slane %v731, 2
    %v733 = vmax.f32 %v731, %v732
    %v734 = vrot.slane %v733, 1
    %v735 = vmax.f32 %v733, %v734
    %v736 = vsel %vm447, %v725, -inf
    %v737 = vrot.slane %v736, 4
    %v738 = vmax.f32 %v736, %v737
    %v739 = vrot.slane %v738, 2
    %v740 = vmax.f32 %v738, %v739
    %v741 = vrot.slane %v740, 1
    %v742 = vmax.f32 %v740, %v741
    %v743 = vsel %vm447, %v722, -inf
    %v744 = vrot.slane %v743, 4
    %v745 = vmax.f32 %v743, %v744
    %v746 = vrot.slane %v745, 2
    %v747 = vmax.f32 %v745, %v746
    %v748 = vrot.slane %v747, 1
    %v749 = vmax.f32 %v747, %v748
    %v750 = vsel %vm447, %v726, -inf
    %v751 = vrot.slane %v750, 4
    %v752 = vmax.f32 %v750, %v751
    %v753 = vrot.slane %v752, 2
    %v754 = vmax.f32 %v752, %v753
    %v755 = vrot.slane %v754, 1
    %v756 = vmax.f32 %v754, %v755
    %v757 = vpack.c.bf16 %v735, %v735
    %v758 = vpack.c.bf16 %v742, %v742
    %v759 = vpack.c.bf16 %v749, %v749
    %v760 = vpack.c.bf16 %v756, %v756
    %v761 = vld [vmem:[#allocation8] sm:$0xf]
    %v762 = vld [vmem:[#allocation8 + $0x4] sm:$0xf]
    %v763 = vld [vmem:[#allocation8 + $0x8] sm:$0xf]
    %v764 = vld [vmem:[#allocation8 + $0xc] sm:$0xf]
    %v765 = vld [vmem:[#allocation8 + $0x10] sm:$0xf]
    %v766 = vld [vmem:[#allocation8 + $0x14] sm:$0xf]
    %v767 = vld [vmem:[#allocation8 + $0x18] sm:$0xf]
    %v768 = vld [vmem:[#allocation8 + $0x1c] sm:$0xf]
    %v769 = vld [vmem:[#allocation8 + $0x20] sm:$0xf]
    %v770 = vld [vmem:[#allocation8 + $0x24] sm:$0xf]
    %v771 = vld [vmem:[#allocation8 + $0x28] sm:$0xf]
    %v772 = vld [vmem:[#allocation8 + $0x2c] sm:$0xf]
    %v773 = vld [vmem:[#allocation8 + $0x30] sm:$0xf]
    %v774 = vld [vmem:[#allocation8 + $0x34] sm:$0xf]
    %v775 = vld [vmem:[#allocation8 + $0x38] sm:$0xf]
    %v776 = vld [vmem:[#allocation8 + $0x3c] sm:$0xf]
    %v777 = vld [vmem:[#allocation11] sm:$0x1]
    %v779 = vperm.slane %v777, 0
    %v785 = vunpack.c.l.b16 %v757
    %v786 = vunpack.c.l.b16 %v758
    %v787 = vunpack.c.l.b16 %v759
    %v788 = vunpack.c.l.b16 %v760
    %v789 = vsel %vm512, %v786, %v785
    %v790 = vsel %vm514, %v787, %v789
    %v791 = vsel %vm516, %v788, %v790
    %v792 = vpack.c.b16 %v791, %v791
    %v810 = vunpack.c.l.b16 %v761
    %v811 = vunpack.c.l.b16 %v762
    %v812 = vunpack.c.l.b16 %v763
    %v813 = vunpack.c.l.b16 %v764
    %v814 = vunpack.c.l.b16 %v765
    %v815 = vunpack.c.l.b16 %v766
    %v816 = vunpack.c.l.b16 %v767
    %v817 = vunpack.c.l.b16 %v768
    %v818 = vunpack.c.l.b16 %v769
    %v819 = vunpack.c.l.b16 %v770
    %v820 = vunpack.c.l.b16 %v771
    %v821 = vunpack.c.l.b16 %v772
    %v822 = vunpack.c.l.b16 %v773
    %v823 = vunpack.c.l.b16 %v774
    %v824 = vunpack.c.l.b16 %v775
    %v825 = vunpack.c.l.b16 %v776
    %v826 = vpack.c.b16 %v811, %v810
    %v827 = vpack.c.b16 %v813, %v812
    %v828 = vpack.c.b16 %v815, %v814
    %v829 = vpack.c.b16 %v817, %v816
    %v830 = vpack.c.b16 %v819, %v818
    %v831 = vpack.c.b16 %v821, %v820
    %v832 = vpack.c.b16 %v823, %v822
    %v833 = vpack.c.b16 %v825, %v824
    %842 = vmatpush.bf16.msra.mxu0 %v833
    %843 = vmatpush.bf16.msra.mxu0 %v832
    %844 = vmatpush.bf16.msra.mxu0 %v831
    %845 = vmatpush.bf16.msra.mxu0 %v830
    %846 = vmatpush.bf16.msra.mxu0 %v829
    %847 = vmatpush.bf16.msra.mxu0 %v828
    %848 = vmatpush.bf16.msra.mxu0 %v827
    %849 = vmatpush.bf16.msra.mxu0 %v826
    %850 = vmatmul.bf16.gmra.mxu0 %v792
    %v851 = vpop.f32.mrf.mxu0
    %v852 = vadd.f32 %v779, %v851
    %v853 = vpop.f32.mrf.mxu0
    %854 = vdwg.mxu0
    %v856 = vrot.slane %v852, 2
    %v858 = vld [vmem:[#allocation9] sm:$0xf]
    %v859 = vld [vmem:[#allocation9 + $0x4] sm:$0xf]
    %v860 = vld [vmem:[#allocation9 + $0x8] sm:$0xf]
    %v861 = vld [vmem:[#allocation9 + $0xc] sm:$0xf]
    %v866 = vunpack.c.l.b16 %v858
    %v867 = vunpack.c.l.b16 %v859
    %v868 = vunpack.c.l.b16 %v860
    %v869 = vunpack.c.l.b16 %v861
    %v870 = vpack.c.b16 %v867, %v866
    %v871 = vpack.c.b16 %v869, %v868
    %vm874 = vcmask 261120
    %v876 = vsel %vm874, 0, 0
    %878 = vmatpush.bf16.msra.mxu0 0
    %879 = vmatpush.bf16.msra.mxu0 0
    %880 = vmatpush.bf16.msra.mxu0 0
    %881 = vmatpush.bf16.msra.mxu0 0
    %882 = vmatpush.bf16.msra.mxu0 0
    %883 = vmatpush.bf16.msra.mxu0 0
    %884 = vmatpush.bf16.msra.mxu0 %v871
    %885 = vmatpush.bf16.msra.mxu0 %v870
    %886 = vmatmul.bf16.gmra.mxu0 %v876
    %v887 = vpop.f32.mrf.mxu0
    %v888 = vadd.f32 0.0, %v887
    %v889 = vpop.f32.mrf.mxu0
    %890 = vdwg.mxu0
    %v892 = vrot.slane %v888, 1
    %v895 = vadd.f32 %v852, %v888
    %v896 = vadd.f32 %v856, %v892
    %v897 = vxor.u32 %v895, 2147483648
    %v898 = vxor.u32 %v896, 2147483648
    %v899 = vmul.f32 %v897, 1.442695
    %v900 = vpow.pop %v899
    %v901 = vmul.f32 %v898, 1.442695
    %v902 = vpow.pop %v901
    %v903 = vadd.f32 %v900, 1.0
    %v904 = vadd.f32 %v902, 1.0
    %v905 = vrcp.pop %v903
    %v906 = vmul.f32 %v903, %v905
    %v907 = vsub.f32 1.0, %v906
    %v908 = vmul.f32 %v905, %v907
    %v909 = vadd.f32 %v905, %v908
    %vm910 = vweird.f32 %v903
    %vm911 = vweird.f32 %v905
    %vm912 = vmor %vm910, %vm911
    %v913 = vsel %vm912, %v905, %v909
    %v914 = vand.u32 2147483647, %v903
    %vm915 = vcmp.eq.f32.partialorder %v914, 8.507059e+37
    %v916 = vand.u32 %v903, 2147483648
    %v917 = vor.u32 1.1754944e-38, %v916
    %v918 = vsel %vm915, %v917, %v913
    %v919 = vmul.f32 1.0, %v918
    %v920 = vrcp.pop %v904
    %v921 = vmul.f32 %v904, %v920
    %v922 = vsub.f32 1.0, %v921
    %v923 = vmul.f32 %v920, %v922
    %v924 = vadd.f32 %v920, %v923
    %vm925 = vweird.f32 %v904
    %vm926 = vweird.f32 %v920
    %vm927 = vmor %vm925, %vm926
    %v928 = vsel %vm927, %v920, %v924
    %v929 = vand.u32 2147483647, %v904
    %vm930 = vcmp.eq.f32.partialorder %v929, 8.507059e+37
    %v931 = vand.u32 %v904, 2147483648
    %v932 = vor.u32 1.1754944e-38, %v931
    %v933 = vsel %vm930, %v932, %v928
    %v934 = vmul.f32 1.0, %v933
    %v935 = vtanh.pop %v895
    %v936 = vtanh.pop %v896
    %v937 = vmul.f32 %v919, 0.0
    %v938 = vmul.f32 %v934, 0.0
    %941 = vrot.lane.b32.xlu0 %v935, 64
    %v942 = vpop.permute.xlu0 %941
    %943 = vrot.lane.b32.xlu0 %v936, 64
    %v944 = vpop.permute.xlu0 %943
    %v947 = vmul.f32 %v919, %v942
    %v948 = vmul.f32 %v934, %v944
    %951 = vrot.lane.b32.xlu0 %v947, 32
    %v952 = vpop.permute.xlu0 %951
    %953 = vrot.lane.b32.xlu0 %v948, 32
    %v954 = vpop.permute.xlu0 %953
    %v957 = vadd.f32 %v937, %v952
    %v958 = vadd.f32 %v938, %v954
    %v959 = vtanh.pop %v957
    %v960 = vtanh.pop %v958
    %963 = vrot.lane.b32.xlu0 %v959, 64
    %v964 = vpop.permute.xlu0 %963
    %965 = vrot.lane.b32.xlu0 %v960, 64
    %v966 = vpop.permute.xlu0 %965
    %v969 = vmul.f32 %v919, %v964
    %v970 = vmul.f32 %v934, %v966
    %v971 = vpack.c.bf16 %v969, %v969
    %v972 = vpack.c.bf16 %v970, %v970
    %v975 = vunpack.c.l.b16 %v971
    %v976 = vunpack.c.l.b16 %v972
    %v977 = vrot.slane %v976, 7
    %v978 = vsel %vm512, %v977, %v975
    %v979 = vpack.c.b16 %v978, %v978
    %980 = vrot.lane.b32.xlu0 %v979, 32
    %v981 = vpop.permute.xlu0 %980
    %v983 = vsel %vm874, %v981, 0
    %985 = vmatpush.bf16.msra.mxu0 0
    %986 = vmatpush.bf16.msra.mxu0 0
    %987 = vmatpush.bf16.msra.mxu0 0
    %988 = vmatpush.bf16.msra.mxu0 0
    %989 = vmatpush.bf16.msra.mxu0 0
    %990 = vmatpush.bf16.msra.mxu0 0
    %991 = vmatpush.bf16.msra.mxu0 %v871
    %992 = vmatpush.bf16.msra.mxu0 %v870
    %993 = vmatmul.bf16.gmra.mxu0 %v983
    %v994 = vpop.f32.mrf.mxu0
    %v995 = vadd.f32 0.0, %v994
    %v996 = vpop.f32.mrf.mxu0
    %997 = vdwg.mxu0
    %v999 = vrot.slane %v995, 7
    %v1002 = vadd.f32 %v852, %v999
    %v1003 = vadd.f32 %v856, %v995
    %v1004 = vxor.u32 %v1002, 2147483648
    %v1005 = vxor.u32 %v1003, 2147483648
    %v1006 = vmul.f32 %v1004, 1.442695
    %v1007 = vpow.pop %v1006
    %v1008 = vmul.f32 %v1005, 1.442695
    %v1009 = vpow.pop %v1008
    %v1010 = vadd.f32 %v1007, 1.0
    %v1011 = vadd.f32 %v1009, 1.0
    %v1012 = vrcp.pop %v1010
    %v1013 = vmul.f32 %v1010, %v1012
    %v1014 = vsub.f32 1.0, %v1013
    %v1015 = vmul.f32 %v1012, %v1014
    %v1016 = vadd.f32 %v1012, %v1015
    %vm1017 = vweird.f32 %v1010
    %vm1018 = vweird.f32 %v1012
    %vm1019 = vmor %vm1017, %vm1018
    %v1020 = vsel %vm1019, %v1012, %v1016
    %v1021 = vand.u32 2147483647, %v1010
    %vm1022 = vcmp.eq.f32.partialorder %v1021, 8.507059e+37
    %v1023 = vand.u32 %v1010, 2147483648
    %v1024 = vor.u32 1.1754944e-38, %v1023
    %v1025 = vsel %vm1022, %v1024, %v1020
    %v1026 = vmul.f32 1.0, %v1025
    %v1027 = vrcp.pop %v1011
    %v1028 = vmul.f32 %v1011, %v1027
    %v1029 = vsub.f32 1.0, %v1028
    %v1030 = vmul.f32 %v1027, %v1029
    %v1031 = vadd.f32 %v1027, %v1030
    %vm1032 = vweird.f32 %v1011
    %vm1033 = vweird.f32 %v1027
    %vm1034 = vmor %vm1032, %vm1033
    %v1035 = vsel %vm1034, %v1027, %v1031
    %v1036 = vand.u32 2147483647, %v1011
    %vm1037 = vcmp.eq.f32.partialorder %v1036, 8.507059e+37
    %v1038 = vand.u32 %v1011, 2147483648
    %v1039 = vor.u32 1.1754944e-38, %v1038
    %v1040 = vsel %vm1037, %v1039, %v1035
    %v1041 = vmul.f32 1.0, %v1040
    %v1042 = vtanh.pop %v1002
    %v1043 = vtanh.pop %v1003
    %v1046 = vrot.slane %v957, 7
    %v1047 = vrot.slane %v958, 7
    %v1050 = vmul.f32 %v1026, %v1046
    %v1051 = vmul.f32 %v1041, %v1047
    %1054 = vrot.lane.b32.xlu0 %v1042, 64
    %v1055 = vpop.permute.xlu0 %1054
    %1056 = vrot.lane.b32.xlu0 %v1043, 64
    %v1057 = vpop.permute.xlu0 %1056
    %v1060 = vmul.f32 %v1026, %v1055
    %v1061 = vmul.f32 %v1041, %v1057
    %1064 = vrot.lane.b32.xlu0 %v1060, 32
    %v1065 = vpop.permute.xlu0 %1064
    %1066 = vrot.lane.b32.xlu0 %v1061, 32
    %v1067 = vpop.permute.xlu0 %1066
    %v1070 = vadd.f32 %v1050, %v1065
    %v1071 = vadd.f32 %v1051, %v1067
    %v1072 = vtanh.pop %v1070
    %v1073 = vtanh.pop %v1071
    %1076 = vrot.lane.b32.xlu0 %v1072, 64
    %v1077 = vpop.permute.xlu0 %1076
    %1078 = vrot.lane.b32.xlu0 %v1073, 64
    %v1079 = vpop.permute.xlu0 %1078
    %v1082 = vmul.f32 %v1026, %v1077
    %v1083 = vmul.f32 %v1041, %v1079
    %v1084 = vld [vmem:[#allocation12] sm:$0xf]
    %v1085 = vld [vmem:[#allocation12 + $0x4] sm:$0xf]
    %v1086 = vld [vmem:[#allocation12 + $0x8] sm:$0xf]
    %v1087 = vld [vmem:[#allocation12 + $0xc] sm:$0xf]
    %v1088 = vld [vmem:[#allocation12 + $0x10] sm:$0xf]
    %v1089 = vld [vmem:[#allocation12 + $0x14] sm:$0xf]
    %v1090 = vld [vmem:[#allocation12 + $0x18] sm:$0xf]
    %v1091 = vld [vmem:[#allocation12 + $0x1c] sm:$0xf]
    %v1092 = vld [vmem:[#allocation12 + $0x20] sm:$0xf]
    %v1093 = vld [vmem:[#allocation12 + $0x24] sm:$0xf]
    %v1094 = vld [vmem:[#allocation12 + $0x28] sm:$0xf]
    %v1095 = vld [vmem:[#allocation12 + $0x2c] sm:$0xf]
    %v1096 = vld [vmem:[#allocation12 + $0x30] sm:$0xf]
    %v1097 = vld [vmem:[#allocation12 + $0x34] sm:$0xf]
    %v1098 = vld [vmem:[#allocation12 + $0x38] sm:$0xf]
    %v1099 = vld [vmem:[#allocation12 + $0x3c] sm:$0xf]
    %v1100 = vld [vmem:[#allocation14] sm:$0x1]
    %v1102 = vperm.slane %v1100, 0
    %v1104 = vsel %vm512, %v788, %v786
    %v1105 = vpack.c.b16 %v1104, %v1104
    %v1123 = vunpack.c.l.b16 %v1084
    %v1124 = vunpack.c.l.b16 %v1085
    %v1125 = vunpack.c.l.b16 %v1086
    %v1126 = vunpack.c.l.b16 %v1087
    %v1127 = vunpack.c.l.b16 %v1088
    %v1128 = vunpack.c.l.b16 %v1089
    %v1129 = vunpack.c.l.b16 %v1090
    %v1130 = vunpack.c.l.b16 %v1091
    %v1131 = vunpack.c.l.b16 %v1092
    %v1132 = vunpack.c.l.b16 %v1093
    %v1133 = vunpack.c.l.b16 %v1094
    %v1134 = vunpack.c.l.b16 %v1095
    %v1135 = vunpack.c.l.b16 %v1096
    %v1136 = vunpack.c.l.b16 %v1097
    %v1137 = vunpack.c.l.b16 %v1098
    %v1138 = vunpack.c.l.b16 %v1099
    %v1139 = vpack.c.b16 %v1124, %v1123
    %v1140 = vpack.c.b16 %v1126, %v1125
    %v1141 = vpack.c.b16 %v1128, %v1127
    %v1142 = vpack.c.b16 %v1130, %v1129
    %v1143 = vpack.c.b16 %v1132, %v1131
    %v1144 = vpack.c.b16 %v1134, %v1133
    %v1145 = vpack.c.b16 %v1136, %v1135
    %v1146 = vpack.c.b16 %v1138, %v1137
    %1155 = vmatpush.bf16.msra.mxu0 %v1146
    %1156 = vmatpush.bf16.msra.mxu0 %v1145
    %1157 = vmatpush.bf16.msra.mxu0 %v1144
    %1158 = vmatpush.bf16.msra.mxu0 %v1143
    %1159 = vmatpush.bf16.msra.mxu0 %v1142
    %1160 = vmatpush.bf16.msra.mxu0 %v1141
    %1161 = vmatpush.bf16.msra.mxu0 %v1140
    %1162 = vmatpush.bf16.msra.mxu0 %v1139
    %1163 = vmatmul.bf16.gmra.mxu0 %v1105
    %v1164 = vpop.f32.mrf.mxu0
    %v1165 = vadd.f32 %v1102, %v1164
    %v1166 = vpop.f32.mrf.mxu0
    %1167 = vdwg.mxu0
    %v1168 = vxor.u32 %v1165, 2147483648
    %v1169 = vmul.f32 %v1168, 1.442695
    %v1170 = vpow.pop %v1169
    %v1171 = vadd.f32 %v1170, 1.0
    %v1172 = vrcp.pop %v1171
    %v1173 = vmul.f32 %v1171, %v1172
    %v1174 = vsub.f32 1.0, %v1173
    %v1175 = vmul.f32 %v1172, %v1174
    %v1176 = vadd.f32 %v1172, %v1175
    %vm1177 = vweird.f32 %v1171
    %vm1178 = vweird.f32 %v1172
    %vm1179 = vmor %vm1177, %vm1178
    %v1180 = vsel %vm1179, %v1172, %v1176
    %v1181 = vand.u32 2147483647, %v1171
    %vm1182 = vcmp.eq.f32.partialorder %v1181, 8.507059e+37
    %v1183 = vand.u32 %v1171, 2147483648
    %v1184 = vor.u32 1.1754944e-38, %v1183
    %v1185 = vsel %vm1182, %v1184, %v1180
    %v1186 = vmul.f32 1.0, %v1185
    %v1187 = vtanh.pop %v1165
    %1189 = vrot.lane.b32.xlu0 %v1187, 64
    %v1190 = vpop.permute.xlu0 %1189
    %v1192 = vmul.f32 %v1186, %v1190
    %v1193 = vtanh.pop %v1192
    %1195 = vrot.lane.b32.xlu0 %v1193, 96
    %v1196 = vpop.permute.xlu0 %1195
    %v1198 = vmul.f32 %v1186, %v1196
    %v1201 = vperm.slane %v1082, 1
    %v1202 = vperm.slane %v1083, 1
    %v1203 = vsel %vm514, %v1202, %v1201
    %1204 = vrot.lane.b32.xlu0 %v1203, 32
    %v1205 = vpop.permute.xlu0 %1204
    %v1208 = vrot.slane %v1198, 7
    %1209 = vrot.lane.b32.xlu0 %v1208, 64
    %v1210 = vpop.permute.xlu0 %1209
    %v1212 = vsel %vm874, %v1205, %v1210
    %v1213 = vpack.c.bf16 %v1212, %v1212
    %v1214 = vld [vmem:[#allocation15] sm:$0xff]
    %v1215 = vld [vmem:[#allocation15 + $0x8] sm:$0xff]
    %v1216 = vld [vmem:[#allocation15 + $0x10] sm:$0xff]
    %v1217 = vld [vmem:[#allocation15 + $0x18] sm:$0xff]
    %v1218 = vld [vmem:[#allocation15 + $0x20] sm:$0xff]
    %v1219 = vld [vmem:[#allocation15 + $0x28] sm:$0xff]
    %v1220 = vld [vmem:[#allocation15 + $0x30] sm:$0xff]
    %v1221 = vld [vmem:[#allocation15 + $0x38] sm:$0xff]
    %v1222 = vld [vmem:[%s9] sm:$0x3]
    %v1224 = vperm.slane %v1222, 0
    %v1225 = vperm.slane %v1222, 1
    %v1229 = vshrl.u32 %v1213, 16
    %v1231 = vshll.u32 %v1213, 16
    %v1233 = vrot.slane %v1231, 1
    %v1234 = vor.u32 %v1229, %v1233
    %v1243 = vunpack.c.l.b16 %v1214
    %v1244 = vunpack.c.h.b16 %v1214
    %v1245 = vunpack.c.l.b16 %v1215
    %v1246 = vunpack.c.h.b16 %v1215
    %v1247 = vunpack.c.l.b16 %v1216
    %v1248 = vunpack.c.h.b16 %v1216
    %v1249 = vunpack.c.l.b16 %v1217
    %v1250 = vunpack.c.h.b16 %v1217
    %v1251 = vunpack.c.l.b16 %v1218
    %v1252 = vunpack.c.h.b16 %v1218
    %v1253 = vunpack.c.l.b16 %v1219
    %v1254 = vunpack.c.h.b16 %v1219
    %v1255 = vunpack.c.l.b16 %v1220
    %v1256 = vunpack.c.h.b16 %v1220
    %v1257 = vunpack.c.l.b16 %v1221
    %v1258 = vunpack.c.h.b16 %v1221
    %v1259 = vpack.c.b16 %v1245, %v1243
    %v1260 = vpack.c.b16 %v1246, %v1244
    %v1261 = vpack.c.b16 %v1249, %v1247
    %v1262 = vpack.c.b16 %v1250, %v1248
    %v1263 = vpack.c.b16 %v1253, %v1251
    %v1264 = vpack.c.b16 %v1254, %v1252
    %v1265 = vpack.c.b16 %v1257, %v1255
    %v1266 = vpack.c.b16 %v1258, %v1256
    %vm1275 = vcmask 523264
    %v1277 = vsel %vm1275, %v1234, 0
    %1279 = vmatpush.bf16.msra.mxu0 0
    %1280 = vmatpush.bf16.msra.mxu0 0
    %1281 = vmatpush.bf16.msra.mxu0 0
    %1282 = vmatpush.bf16.msra.mxu0 0
    %1283 = vmatpush.bf16.msra.mxu0 %v1265
    %1284 = vmatpush.bf16.msra.mxu0 %v1263
    %1285 = vmatpush.bf16.msra.mxu0 %v1261
    %1286 = vmatpush.bf16.msra.mxu0 %v1259
    %1287 = vmatmul.bf16.gmra.mxu0 %v1277
    %v1288 = vpop.f32.mrf.mxu0
    %v1289 = vadd.f32 %v1224, %v1288
    %v1290 = vpop.f32.mrf.mxu0
    %1291 = vdwg.mxu0
    %1292 = vmatpush.bf16.msra.mxu0 0
    %1293 = vmatpush.bf16.msra.mxu0 0
    %1294 = vmatpush.bf16.msra.mxu0 0
    %1295 = vmatpush.bf16.msra.mxu0 0
    %1296 = vmatpush.bf16.msra.mxu0 %v1266
    %1297 = vmatpush.bf16.msra.mxu0 %v1264
    %1298 = vmatpush.bf16.msra.mxu0 %v1262
    %1299 = vmatpush.bf16.msra.mxu0 %v1260
    %1300 = vmatmul.bf16.gmra.mxu0 %v1277
    %v1301 = vpop.f32.mrf.mxu0
    %v1302 = vadd.f32 %v1225, %v1301
    %v1303 = vpop.f32.mrf.mxu0
    %1304 = vdwg.mxu0
    %v1305 = vmax.f32 %v1289, 0.0
    %v1306 = vmax.f32 %v1302, 0.0
    %v1307 = vpack.c.bf16 %v1305, %v1305
    %v1308 = vpack.c.bf16 %v1306, %v1306
    %v1309 = vld [vmem:[#allocation17] sm:$0xf]
    %v1310 = vld [vmem:[#allocation17 + $0x4] sm:$0xf]
    %v1311 = vld [vmem:[#allocation17 + $0x8] sm:$0xf]
    %v1312 = vld [vmem:[#allocation17 + $0xc] sm:$0xf]
    %v1313 = vld [vmem:[#allocation17 + $0x10] sm:$0xf]
    %v1314 = vld [vmem:[#allocation17 + $0x14] sm:$0xf]
    %v1315 = vld [vmem:[#allocation17 + $0x18] sm:$0xf]
    %v1316 = vld [vmem:[#allocation17 + $0x1c] sm:$0xf]
    %v1317 = vld [vmem:[#allocation17 + $0x20] sm:$0xf]
    %v1318 = vld [vmem:[#allocation17 + $0x24] sm:$0xf]
    %v1319 = vld [vmem:[#allocation17 + $0x28] sm:$0xf]
    %v1320 = vld [vmem:[#allocation17 + $0x2c] sm:$0xf]
    %v1321 = vld [vmem:[#allocation17 + $0x30] sm:$0xf]
    %v1322 = vld [vmem:[#allocation17 + $0x34] sm:$0xf]
    %v1323 = vld [vmem:[#allocation17 + $0x38] sm:$0xf]
    %v1324 = vld [vmem:[#allocation17 + $0x3c] sm:$0xf]
    %v1325 = vld [vmem:[#allocation17 + $0x40] sm:$0xf]
    %v1326 = vld [vmem:[#allocation17 + $0x44] sm:$0xf]
    %v1327 = vld [vmem:[#allocation17 + $0x48] sm:$0xf]
    %v1328 = vld [vmem:[#allocation17 + $0x4c] sm:$0xf]
    %v1329 = vld [vmem:[#allocation17 + $0x50] sm:$0xf]
    %v1330 = vld [vmem:[#allocation17 + $0x54] sm:$0xf]
    %v1331 = vld [vmem:[#allocation17 + $0x58] sm:$0xf]
    %v1332 = vld [vmem:[#allocation17 + $0x5c] sm:$0xf]
    %v1333 = vld [vmem:[#allocation17 + $0x60] sm:$0xf]
    %v1334 = vld [vmem:[#allocation17 + $0x64] sm:$0xf]
    %v1335 = vld [vmem:[#allocation17 + $0x68] sm:$0xf]
    %v1336 = vld [vmem:[#allocation17 + $0x6c] sm:$0xf]
    %v1337 = vld [vmem:[#allocation17 + $0x70] sm:$0xf]
    %v1338 = vld [vmem:[#allocation17 + $0x74] sm:$0xf]
    %v1339 = vld [vmem:[#allocation17 + $0x78] sm:$0xf]
    %v1340 = vld [vmem:[#allocation17 + $0x7c] sm:$0xf]
    %v1341 = vld [vmem:[%s11] sm:$0x1]
    %v1343 = vperm.slane %v1341, 0
    %v1377 = vunpack.c.l.b16 %v1309
    %v1378 = vunpack.c.l.b16 %v1310
    %v1379 = vunpack.c.l.b16 %v1311
    %v1380 = vunpack.c.l.b16 %v1312
    %v1381 = vunpack.c.l.b16 %v1313
    %v1382 = vunpack.c.l.b16 %v1314
    %v1383 = vunpack.c.l.b16 %v1315
    %v1384 = vunpack.c.l.b16 %v1316
    %v1385 = vunpack.c.l.b16 %v1317
    %v1386 = vunpack.c.l.b16 %v1318
    %v1387 = vunpack.c.l.b16 %v1319
    %v1388 = vunpack.c.l.b16 %v1320
    %v1389 = vunpack.c.l.b16 %v1321
    %v1390 = vunpack.c.l.b16 %v1322
    %v1391 = vunpack.c.l.b16 %v1323
    %v1392 = vunpack.c.l.b16 %v1324
    %v1393 = vunpack.c.l.b16 %v1325
    %v1394 = vunpack.c.l.b16 %v1326
    %v1395 = vunpack.c.l.b16 %v1327
    %v1396 = vunpack.c.l.b16 %v1328
    %v1397 = vunpack.c.l.b16 %v1329
    %v1398 = vunpack.c.l.b16 %v1330
    %v1399 = vunpack.c.l.b16 %v1331
    %v1400 = vunpack.c.l.b16 %v1332
    %v1401 = vunpack.c.l.b16 %v1333
    %v1402 = vunpack.c.l.b16 %v1334
    %v1403 = vunpack.c.l.b16 %v1335
    %v1404 = vunpack.c.l.b16 %v1336
    %v1405 = vunpack.c.l.b16 %v1337
    %v1406 = vunpack.c.l.b16 %v1338
    %v1407 = vunpack.c.l.b16 %v1339
    %v1408 = vunpack.c.l.b16 %v1340
    %v1409 = vpack.c.b16 %v1378, %v1377
    %v1410 = vpack.c.b16 %v1380, %v1379
    %v1411 = vpack.c.b16 %v1382, %v1381
    %v1412 = vpack.c.b16 %v1384, %v1383
    %v1413 = vpack.c.b16 %v1386, %v1385
    %v1414 = vpack.c.b16 %v1388, %v1387
    %v1415 = vpack.c.b16 %v1390, %v1389
    %v1416 = vpack.c.b16 %v1392, %v1391
    %v1417 = vpack.c.b16 %v1394, %v1393
    %v1418 = vpack.c.b16 %v1396, %v1395
    %v1419 = vpack.c.b16 %v1398, %v1397
    %v1420 = vpack.c.b16 %v1400, %v1399
    %v1421 = vpack.c.b16 %v1402, %v1401
    %v1422 = vpack.c.b16 %v1404, %v1403
    %v1423 = vpack.c.b16 %v1406, %v1405
    %v1424 = vpack.c.b16 %v1408, %v1407
    %1441 = vmatpush.bf16.msra.mxu0 %v1416
    %1442 = vmatpush.bf16.msra.mxu0 %v1415
    %1443 = vmatpush.bf16.msra.mxu0 %v1414
    %1444 = vmatpush.bf16.msra.mxu0 %v1413
    %1445 = vmatpush.bf16.msra.mxu0 %v1412
    %1446 = vmatpush.bf16.msra.mxu0 %v1411
    %1447 = vmatpush.bf16.msra.mxu0 %v1410
    %1448 = vmatpush.bf16.msra.mxu0 %v1409
    %1449 = vmatmul.bf16.gmra.mxu0 %v1307
    %v1450 = vpop.f32.mrf.mxu0
    %v1451 = vadd.f32 %v1343, %v1450
    %v1452 = vpop.f32.mrf.mxu0
    %1453 = vdwg.mxu0
    %1454 = vmatpush.bf16.msra.mxu0 %v1424
    %1455 = vmatpush.bf16.msra.mxu0 %v1423
    %1456 = vmatpush.bf16.msra.mxu0 %v1422
    %1457 = vmatpush.bf16.msra.mxu0 %v1421
    %1458 = vmatpush.bf16.msra.mxu0 %v1420
    %1459 = vmatpush.bf16.msra.mxu0 %v1419
    %1460 = vmatpush.bf16.msra.mxu0 %v1418
    %1461 = vmatpush.bf16.msra.mxu0 %v1417
    %1462 = vmatmul.bf16.gmra.mxu0 %v1308
    %v1463 = vpop.f32.mrf.mxu0
    %v1464 = vadd.f32 %v1451, %v1463
    %v1465 = vpop.f32.mrf.mxu0
    %1466 = vdwg.mxu0
    %v1467 = vmax.f32 %v1464, 0.0
    %v1468 = vpack.c.bf16 %v1467, %v1467
    %v1469 = vld [vmem:[%s12] sm:$0xf]
    %v1470 = vld [vmem:[%s12 + $0x4] sm:$0xf]
    %v1471 = vld [vmem:[%s12 + $0x8] sm:$0xf]
    %v1472 = vld [vmem:[%s12 + $0xc] sm:$0xf]
    %v1473 = vld [vmem:[%s12 + $0x10] sm:$0xf]
    %v1474 = vld [vmem:[%s12 + $0x14] sm:$0xf]
    %v1475 = vld [vmem:[%s12 + $0x18] sm:$0xf]
    %v1476 = vld [vmem:[%s12 + $0x1c] sm:$0xf]
    %v1477 = vld [vmem:[%s12 + $0x20] sm:$0xf]
    %v1478 = vld [vmem:[%s12 + $0x24] sm:$0xf]
    %v1479 = vld [vmem:[%s12 + $0x28] sm:$0xf]
    %v1480 = vld [vmem:[%s12 + $0x2c] sm:$0xf]
    %v1481 = vld [vmem:[%s12 + $0x30] sm:$0xf]
    %v1482 = vld [vmem:[%s12 + $0x34] sm:$0xf]
    %v1483 = vld [vmem:[%s12 + $0x38] sm:$0xf]
    %v1484 = vld [vmem:[%s12 + $0x3c] sm:$0xf]
    %v1485 = vld [vmem:[%s13] sm:$0x1]
    %v1487 = vperm.slane %v1485, 0
    %v1505 = vunpack.c.l.b16 %v1469
    %v1506 = vunpack.c.l.b16 %v1470
    %v1507 = vunpack.c.l.b16 %v1471
    %v1508 = vunpack.c.l.b16 %v1472
    %v1509 = vunpack.c.l.b16 %v1473
    %v1510 = vunpack.c.l.b16 %v1474
    %v1511 = vunpack.c.l.b16 %v1475
    %v1512 = vunpack.c.l.b16 %v1476
    %v1513 = vunpack.c.l.b16 %v1477
    %v1514 = vunpack.c.l.b16 %v1478
    %v1515 = vunpack.c.l.b16 %v1479
    %v1516 = vunpack.c.l.b16 %v1480
    %v1517 = vunpack.c.l.b16 %v1481
    %v1518 = vunpack.c.l.b16 %v1482
    %v1519 = vunpack.c.l.b16 %v1483
    %v1520 = vunpack.c.l.b16 %v1484
    %v1521 = vpack.c.b16 %v1506, %v1505
    %v1522 = vpack.c.b16 %v1508, %v1507
    %v1523 = vpack.c.b16 %v1510, %v1509
    %v1524 = vpack.c.b16 %v1512, %v1511
    %v1525 = vpack.c.b16 %v1514, %v1513
    %v1526 = vpack.c.b16 %v1516, %v1515
    %v1527 = vpack.c.b16 %v1518, %v1517
    %v1528 = vpack.c.b16 %v1520, %v1519
    %1537 = vmatpush.bf16.msra.mxu0 %v1528
    %1538 = vmatpush.bf16.msra.mxu0 %v1527
    %1539 = vmatpush.bf16.msra.mxu0 %v1526
    %1540 = vmatpush.bf16.msra.mxu0 %v1525
    %1541 = vmatpush.bf16.msra.mxu0 %v1524
    %1542 = vmatpush.bf16.msra.mxu0 %v1523
    %1543 = vmatpush.bf16.msra.mxu0 %v1522
    %1544 = vmatpush.bf16.msra.mxu0 %v1521
    %1545 = vmatmul.bf16.gmra.mxu0 %v1468
    %v1546 = vpop.f32.mrf.mxu0
    %v1547 = vadd.f32 %v1487, %v1546
    %v1548 = vpop.f32.mrf.mxu0
    %1549 = vdwg.mxu0
    %1550 = vst [vmem:[#allocation18] sm:$0x3] %v1547
    // Predicated region
    $region108: #{_lambda_.1} parent=1 // pred_check
      _
    $region109: #{_lambda_.1} parent=1 // pred_check_branch
      %1552 = sbr.rel (0) target = $region111
    $region110: #{_lambda_.1} parent=1 // pred_region
      %1554 = vsyncadd [#allocation5], 0
      %s1556 = sshll.u32 [#allocation18], 4
      %s1557 = int_to_ptr.vmem [resolvable:$true] %s1556
      %s1558 = sshll.u32 %s14, 4
      %s1559 = int_to_ptr.hbm [resolvable:$true] %s1558
      %1561 = dma.vmem_to_hbm [thread:$0]  %s1557, 32, %s1559, [#allocation5]
    $region111: #{_lambda_.1} parent=1 // pred_fallthru
      _
    // Predicated region
    $region112: #{_lambda_.1} parent=1 // pred_check
      _
    $region113: #{_lambda_.1} parent=1 // pred_check_branch
      %1563 = sbr.rel (0) target = $region115
    $region114: #{_lambda_.1} parent=1 // pred_region
      %1565 = dma.done [#allocation5], 32
    $region115: #{_lambda_.1} parent=1 // pred_fallthru
      _
    %1566 = vsyncpa [#allocation4], 1
    %1567 = vsyncpa [#allocation7], 1
    %1568 = vsyncpa [#allocation10], 1
    %1569 = vsyncpa [#allocation13], 1
    %1570 = vsyncpa [#allocation16], 1
    %1571 = vsyncpa [#allocation5], 1

</llo_original>
